<compile_context>
chip_gen: v5e
topology: v5e:2x2
jax: 0.10.0
libtpu: 0.0.40
codegen_flags: <defaults>
</compile_context>

<pallas_src>
import math
from functools import partial

import jax
import jax.numpy as jnp
from jax.experimental import pallas as pl
from jax.experimental.pallas import tpu as pltpu


def _vmem_limit_bytes():
    """Generation-aware scoped-VMEM limit (v7x: 64 MiB physical; v5e/v6e: 128 MiB)."""
    try:
        kind = jax.devices()[0].device_kind.lower()
    except Exception:
        kind = ""
    if "v7" in kind:
        return 48 * 1024 * 1024
    if "v5" in kind or "v6" in kind:
        return 96 * 1024 * 1024
    return 64 * 1024 * 1024


def _round_up(x, m):
    return ((x + m - 1) // m) * m


# ------------------------------ in-kernel helpers ----------------------------

def _ln_f32(x, g, b, eps=1e-12):
    mu = jnp.mean(x, axis=-1, keepdims=True)
    var = jnp.mean((x - mu) ** 2, axis=-1, keepdims=True)
    return (x - mu) * jax.lax.rsqrt(var + eps) * g + b


def _gelu_f32(h):
    # TODO(synk): BERT uses exact erf-GELU; tanh approximation used here.
    c = math.sqrt(2.0 / math.pi)
    return 0.5 * h * (1.0 + jnp.tanh(c * (h + 0.044715 * h * h * h)))


# ----------------------------- Pallas kernels --------------------------------

def _embed_ln_kernel(x_ref, g_ref, b_ref, o_ref):
    o_ref[0] = _ln_f32(x_ref[0], g_ref[...], b_ref[...])


def _encoder_layer_kernel(hq_ref, hf_ref, wq_ref, bq_ref, wkv_ref, bkv_ref,
                          wo_ref, bo_ref, ln1g_ref, ln1b_ref,
                          wi_ref, bi_ref, wo2_ref, bo2_ref, ln2g_ref, ln2b_ref,
                          o_ref, ctx_ref, *, n_heads, len_s1, causal):
    S, H = hf_ref.shape[1], hf_ref.shape[2]
    tS = hq_ref.shape[1]
    Dh = H // n_heads
    qi = pl.program_id(1)

    xq = hq_ref[0]                                   # (tS, H) f32  (query rows)
    xf = hf_ref[0]                                   # (S,  H) f32  (full seq for K/V)

    # Q projection (scale already folded into wq/bq); fused KV projection.
    q = jnp.dot(xq.astype(jnp.bfloat16), wq_ref[...],
                preferred_element_type=jnp.float32) + bq_ref[...]          # (tS, H)
    kv = jnp.dot(xf.astype(jnp.bfloat16), wkv_ref[...],
                 preferred_element_type=jnp.float32) + bkv_ref[...]        # (S, 2H)
    k = kv[:, :H]
    v = kv[:, H:]

    # Additive attention mask built in-kernel (no HBM mask tensor):
    #   allowed[i,j] = (j <= i) or (i < len_s1 and j < len_s1)
    if causal:
        row = jax.lax.broadcasted_iota(jnp.int32, (tS, S), 0) + qi * tS
        col = jax.lax.broadcasted_iota(jnp.int32, (tS, S), 1)
        allowed = (col <= row) | ((row < len_s1) & (col < len_s1))
        mask_bias = jnp.where(allowed, 0.0, -10000.0).astype(jnp.float32)

    # Per-head attention; contexts written lane-dense into a (tS, H) VMEM scratch.
    for hh in range(n_heads):
        qh = q[:, hh * Dh:(hh + 1) * Dh].astype(jnp.bfloat16)
        kh = k[:, hh * Dh:(hh + 1) * Dh].astype(jnp.bfloat16)
        vh = v[:, hh * Dh:(hh + 1) * Dh].astype(jnp.bfloat16)
        scores = jax.lax.dot_general(
            qh, kh, (((1,), (1,)), ((), ())),
            preferred_element_type=jnp.float32)                            # (tS, S)
        if causal:
            scores = scores + mask_bias
        m = jnp.max(scores, axis=-1, keepdims=True)
        p = jnp.exp(scores - m)
        p = p * pl.reciprocal(jnp.sum(p, axis=-1, keepdims=True), approx=True)
        ctx_ref[:, hh * Dh:(hh + 1) * Dh] = jnp.dot(
            p.astype(jnp.bfloat16), vh, preferred_element_type=jnp.float32)

    # Output projection + residual + LayerNorm (fused).
    attn_out = jnp.dot(ctx_ref[...].astype(jnp.bfloat16), wo_ref[...],
                       preferred_element_type=jnp.float32) + bo_ref[...]
    h1 = _ln_f32(xq + attn_out, ln1g_ref[...], ln1b_ref[...])

    # FFN: wi -> GELU -> wo2 entirely in VMEM + residual + LayerNorm (fused).
    ffn = jnp.dot(h1.astype(jnp.bfloat16), wi_ref[...],
                  preferred_element_type=jnp.float32) + bi_ref[...]
    ffn = _gelu_f32(ffn)
    ffn = jnp.dot(ffn.astype(jnp.bfloat16), wo2_ref[...],
                  preferred_element_type=jnp.float32) + bo2_ref[...]
    o_ref[0] = _ln_f32(h1 + ffn, ln2g_ref[...], ln2b_ref[...])


def _classify_ce_kernel(x_ref, w_ref, b_ref, tgt_ref, loss_ref, cnt_ref,
                        m_sc, s_sc, t_sc, nll_acc, cnt_acc):
    # Fused classify matmul + cross-entropy with V-tiled online log-sum-exp.
    i = pl.program_id(0)
    vi = pl.program_id(1)
    nR = pl.num_programs(0)
    nV = pl.num_programs(1)

    @pl.when((i == 0) & (vi == 0))
    def _():
        nll_acc[...] = jnp.zeros_like(nll_acc)
        cnt_acc[...] = jnp.zeros_like(cnt_acc)

    @pl.when(vi == 0)
    def _():
        m_sc[...] = jnp.full_like(m_sc, -jnp.inf)
        s_sc[...] = jnp.zeros_like(s_sc)
        t_sc[...] = jnp.zeros_like(t_sc)

    logits = jnp.dot(x_ref[...].astype(jnp.bfloat16), w_ref[...],
                     preferred_element_type=jnp.float32) + b_ref[...]   # (tm, tV) f32
    tm, tV = logits.shape

    m_new = jnp.maximum(m_sc[...], jnp.max(logits, axis=-1, keepdims=True))
    s_sc[...] = (s_sc[...] * jnp.exp(m_sc[...] - m_new)
                 + jnp.sum(jnp.exp(logits - m_new), axis=-1, keepdims=True))
    m_sc[...] = m_new

    col = jax.lax.broadcasted_iota(jnp.int32, (tm, tV), 1) + vi * tV
    t_sc[...] += jnp.sum(jnp.where(col == tgt_ref[...], logits, 0.0),
                         axis=-1, keepdims=True)

    @pl.when(vi == nV - 1)
    def _():
        lse = m_sc[...] + jnp.log(s_sc[...])
        valid = (tgt_ref[...] != -1).astype(jnp.float32)              # (tm, 1)
        nll_acc[...] += jnp.sum((lse - t_sc[...]) * valid, axis=0, keepdims=True)
        cnt_acc[...] += jnp.sum(valid, axis=0, keepdims=True)

    @pl.when((i == nR - 1) & (vi == nV - 1))
    def _():
        loss_ref[...] = nll_acc[...]
        cnt_ref[...] = cnt_acc[...]


def _classify_lse_kernel(x_ref, w_ref, b_ref, lse_ref, m_sc, s_sc):
    # Pass 1 of the blockwise softmax: V-tiled online log-sum-exp per row.
    vi = pl.program_id(1)
    nV = pl.num_programs(1)

    @pl.when(vi == 0)
    def _():
        m_sc[...] = jnp.full_like(m_sc, -jnp.inf)
        s_sc[...] = jnp.zeros_like(s_sc)

    logits = jnp.dot(x_ref[...].astype(jnp.bfloat16), w_ref[...],
                     preferred_element_type=jnp.float32) + b_ref[...]
    m_new = jnp.maximum(m_sc[...], jnp.max(logits, axis=-1, keepdims=True))
    s_sc[...] = (s_sc[...] * jnp.exp(m_sc[...] - m_new)
                 + jnp.sum(jnp.exp(logits - m_new), axis=-1, keepdims=True))
    m_sc[...] = m_new

    @pl.when(vi == nV - 1)
    def _():
        lse_ref[...] = m_sc[...] + jnp.log(s_sc[...])


def _classify_prob_kernel(x_ref, w_ref, b_ref, lse_ref, o_ref):
    # Pass 2: exact softmax probabilities per (row-tile, V-tile).
    logits = jnp.dot(x_ref[...].astype(jnp.bfloat16), w_ref[...],
                     preferred_element_type=jnp.float32) + b_ref[...]
    o_ref[...] = jnp.exp(logits - lse_ref[...])


# ------------------------------ kernel wrappers -------------------------------

def _const_spec(shape):
    """Grid-invariant operand: single pipeline buffer (no wasted double-buffer)."""
    return pl.BlockSpec(shape, lambda *_: (0,) * len(shape),
                        pipeline_mode=pl.Buffered(1))


def embed_layernorm(x_b3, g, b):
    B, S, H = x_b3.shape
    return pl.pallas_call(
        _embed_ln_kernel,
        out_shape=jax.ShapeDtypeStruct((B, S, H), jnp.float32),
        grid=(B,),
        in_specs=[pl.BlockSpec((1, S, H), lambda i: (i, 0, 0)),
                  _const_spec((1, H)),
                  _const_spec((1, H))],
        out_specs=pl.BlockSpec((1, S, H), lambda i: (i, 0, 0)),
        compiler_params=pltpu.CompilerParams(
            dimension_semantics=("parallel",), vmem_limit_bytes=_vmem_limit_bytes()),
    )(x_b3, g, b)


def encoder_layer(h_b3, layer, n_heads, len_s1, causal):
    B, S, H = h_b3.shape
    I = layer["wi"].shape[1]
    tS = S if S <= 256 else 256          # query-row tile sized for the 256x256 MXU
    assert S % tS == 0                   # TODO(synk): pad S for non-multiple sequence lengths
    NQ = S // tS

    in_specs = [
        pl.BlockSpec((1, tS, H), lambda b, q: (b, q, 0)),   # query rows of h
        pl.BlockSpec((1, S, H), lambda b, q: (b, 0, 0)),    # full seq h (K/V source)
        _const_spec((H, H)),       # wq (bf16, scale folded)
        _const_spec((1, H)),       # bq (scale folded)
        _const_spec((H, 2 * H)),   # wkv (bf16)
        _const_spec((1, 2 * H)),   # bkv
        _const_spec((H, H)),       # wo (bf16)
        _const_spec((1, H)),       # bo
        _const_spec((1, H)),       # ln1 gamma
        _const_spec((1, H)),       # ln1 beta
        _const_spec((H, I)),       # wi (bf16)
        _const_spec((1, I)),       # bi
        _const_spec((I, H)),       # wo2 (bf16)
        _const_spec((1, H)),       # bo2
        _const_spec((1, H)),       # ln2 gamma
        _const_spec((1, H)),       # ln2 beta
    ]
    return pl.pallas_call(
        partial(_encoder_layer_kernel, n_heads=n_heads, len_s1=len_s1, causal=causal),
        out_shape=jax.ShapeDtypeStruct((B, S, H), jnp.float32),
        grid=(B, NQ),
        in_specs=in_specs,
        out_specs=pl.BlockSpec((1, tS, H), lambda b, q: (b, q, 0)),
        scratch_shapes=[pltpu.VMEM((tS, H), jnp.float32)],
        compiler_params=pltpu.CompilerParams(
            dimension_semantics=("parallel", "parallel"),
            vmem_limit_bytes=_vmem_limit_bytes()),
    )(h_b3, h_b3,
      layer["wq"], layer["bq"], layer["wkv"], layer["bkv"],
      layer["wo"], layer["bo"], layer["ln1g"], layer["ln1b"],
      layer["wi"], layer["bi"], layer["wo2"], layer["bo2"],
      layer["ln2g"], layer["ln2b"])


def _classify_row_tiling(M):
    tm = M if M <= 256 else 256
    Mp = M if M % tm == 0 else pl.cdiv(M, tm) * tm
    return tm, Mp


def classify_ce(x2d, w_pad, b_pad, targets):
    M, H = x2d.shape
    Vp = w_pad.shape[1]
    tm, Mp = _classify_row_tiling(M)
    if Mp != M:
        x2d = jnp.pad(x2d, ((0, Mp - M), (0, 0)))
        targets = jnp.pad(targets, (0, Mp - M), constant_values=-1)
    tV = Vp if Vp <= 2048 else 2048
    assert Vp % tV == 0                  # V is pre-padded to a multiple of 128
    tgt = targets.reshape(Mp, 1).astype(jnp.int32)

    nll, cnt = pl.pallas_call(
        _classify_ce_kernel,
        out_shape=(jax.ShapeDtypeStruct((1, 1), jnp.float32),
                   jax.ShapeDtypeStruct((1, 1), jnp.float32)),
        grid=(Mp // tm, Vp // tV),
        in_specs=[pl.BlockSpec((tm, H), lambda i, j: (i, 0)),
                  pl.BlockSpec((H, tV), lambda i, j: (0, j)),
                  pl.BlockSpec((1, tV), lambda i, j: (0, j)),
                  pl.BlockSpec((tm, 1), lambda i, j: (i, 0))],
        out_specs=[pl.BlockSpec((1, 1), lambda i, j: (0, 0)),
                   pl.BlockSpec((1, 1), lambda i, j: (0, 0))],
        scratch_shapes=[pltpu.VMEM((tm, 1), jnp.float32)] * 3
                       + [pltpu.VMEM((1, 1), jnp.float32)] * 2,
        compiler_params=pltpu.CompilerParams(
            dimension_semantics=("arbitrary", "arbitrary"),
            vmem_limit_bytes=_vmem_limit_bytes()),
    )(x2d, w_pad, b_pad, tgt)
    # Mean over valid targets (NaN when everything is ignore_index, like torch).
    return nll[0, 0] / cnt[0, 0]


def classify_softmax(x2d, w_pad, b_pad, vocab_size):
    M, H = x2d.shape
    Vp = w_pad.shape[1]
    tm, Mp = _classify_row_tiling(M)
    if Mp != M:
        x2d = jnp.pad(x2d, ((0, Mp - M), (0, 0)))
    tV = Vp if Vp <= 2048 else 2048
    assert Vp % tV == 0
    grid = (Mp // tm, Vp // tV)
    vmem = _vmem_limit_bytes()

    # Pass 1: per-row log-sum-exp over V tiles.
    lse = pl.pallas_call(
        _classify_lse_kernel,
        out_shape=jax.ShapeDtypeStruct((Mp, 1), jnp.float32),
        grid=grid,
        in_specs=[pl.BlockSpec((tm, H), lambda i, j: (i, 0)),
                  pl.BlockSpec((H, tV), lambda i, j: (0, j)),
                  pl.BlockSpec((1, tV), lambda i, j: (0, j))],
        out_specs=pl.BlockSpec((tm, 1), lambda i, j: (i, 0)),
        scratch_shapes=[pltpu.VMEM((tm, 1), jnp.float32)] * 2,
        compiler_params=pltpu.CompilerParams(
            dimension_semantics=("arbitrary", "arbitrary"), vmem_limit_bytes=vmem),
    )(x2d, w_pad, b_pad)

    # Pass 2: exact probabilities tile-by-tile (no (H,V)-resident weight block).
    probs = pl.pallas_call(
        _classify_prob_kernel,
        out_shape=jax.ShapeDtypeStruct((Mp, Vp), jnp.float32),
        grid=grid,
        in_specs=[pl.BlockSpec((tm, H), lambda i, j: (i, 0)),
                  pl.BlockSpec((H, tV), lambda i, j: (0, j)),
                  pl.BlockSpec((1, tV), lambda i, j: (0, j)),
                  pl.BlockSpec((tm, 1), lambda i, j: (i, 0))],
        out_specs=pl.BlockSpec((tm, tV), lambda i, j: (i, j)),
        compiler_params=pltpu.CompilerParams(
            dimension_semantics=("parallel", "parallel"), vmem_limit_bytes=vmem),
    )(x2d, w_pad, b_pad, lse)
    return probs[:M, :vocab_size]


# ------------------------------- model (glue) ---------------------------------

def init_params(key, vocab_size, hidden, intermediate, max_pos, num_layers):
    def nrm(k, shape, std=0.02):
        return std * jax.random.normal(k, shape, dtype=jnp.float32)

    keys = jax.random.split(key, 8 + num_layers)
    params = {
        "word_emb": nrm(keys[0], (vocab_size, hidden)),
        "pos_emb": nrm(keys[1], (max_pos, hidden)),
        "tok_emb": nrm(keys[2], (2, hidden)),
        "emb_ln_g": jnp.ones((hidden,), jnp.float32),
        "emb_ln_b": jnp.zeros((hidden,), jnp.float32),
        "classify_w": nrm(keys[3], (hidden, vocab_size)),
        "classify_b": jnp.zeros((vocab_size,), jnp.float32),
        "layers": [],
    }
    for l in range(num_layers):
        k = jax.random.split(keys[8 + l], 4)
        params["layers"].append({
            "wqkv": nrm(k[0], (hidden, 3 * hidden)),
            "bqkv": jnp.zeros((3 * hidden,), jnp.float32),
            "wo": nrm(k[1], (hidden, hidden)),
            "bo": jnp.zeros((hidden,), jnp.float32),
            "attn_ln_g": jnp.ones((hidden,), jnp.float32),
            "attn_ln_b": jnp.zeros((hidden,), jnp.float32),
            "wi": nrm(k[2], (hidden, intermediate)),
            "bi": jnp.zeros((intermediate,), jnp.float32),
            "wo2": nrm(k[3], (intermediate, hidden)),
            "bo2": jnp.zeros((hidden,), jnp.float32),
            "ffn_ln_g": jnp.ones((hidden,), jnp.float32),
            "ffn_ln_b": jnp.zeros((hidden,), jnp.float32),
        })
    return params


def prepare_params(params, n_heads):
    """One-time prep: bf16 weights, attention scale folded into Q, V padded to 128."""
    H = params["word_emb"].shape[1]
    V = params["classify_w"].shape[1]
    Vp = _round_up(V, 128)
    scale = 1.0 / math.sqrt(H // n_heads)

    layers = []
    for layer in params["layers"]:
        wqkv, bqkv = layer["wqkv"], layer["bqkv"]
        layers.append({
            "wq": (wqkv[:, :H] * scale).astype(jnp.bfloat16),
            "bq": (bqkv[:H] * scale).reshape(1, H),
            "wkv": wqkv[:, H:].astype(jnp.bfloat16),
            "bkv": bqkv[H:].reshape(1, 2 * H),
            "wo": layer["wo"].astype(jnp.bfloat16),
            "bo": layer["bo"].reshape(1, H),
            "ln1g": layer["attn_ln_g"].reshape(1, H),
            "ln1b": layer["attn_ln_b"].reshape(1, H),
            "wi": layer["wi"].astype(jnp.bfloat16),
            "bi": layer["bi"].reshape(1, -1),
            "wo2": layer["wo2"].astype(jnp.bfloat16),
            "bo2": layer["bo2"].reshape(1, H),
            "ln2g": layer["ffn_ln_g"].reshape(1, H),
            "ln2b": layer["ffn_ln_b"].reshape(1, H),
        })

    cw = jnp.zeros((H, Vp), jnp.float32).at[:, :V].set(params["classify_w"])
    cb = jnp.full((Vp,), -1e9, jnp.float32).at[:V].set(params["classify_b"])
    return {
        "word_emb": params["word_emb"],
        "pos_emb": params["pos_emb"],
        "tok_emb": params["tok_emb"],
        "emb_ln_g": params["emb_ln_g"].reshape(1, H),
        "emb_ln_b": params["emb_ln_b"].reshape(1, H),
        "classify_w": cw.astype(jnp.bfloat16),
        "classify_b": cb.reshape(1, Vp),
        "layers": layers,
    }


def bert_encode(params, x_tokens, n_heads, len_s1, causal):
    B, S = x_tokens.shape
    H = params["word_emb"].shape[1]
    emb = (jnp.take(params["word_emb"], x_tokens, axis=0)
           + params["pos_emb"][:S][None, :, :]
           + params["tok_emb"][0][None, None, :])
    h = embed_layernorm(emb, params["emb_ln_g"], params["emb_ln_b"])   # (B, S, H)
    # TODO(synk): for multi-layer models on v5e, prefetch the next layer's bf16 weights
    # with a cross-pallas_call DMA future to hide the per-layer weight DMA.
    for layer in params["layers"]:
        h = encoder_layer(h, layer, n_heads, len_s1, causal)
    return h.reshape(B * S, H)


def language_model_forward(params, x, len_s1, n_heads, vocab_size, y=None):
    """Mirrors LanguageModel.forward(x, len_s1, y)."""
    B, S = x.shape
    if y is not None:
        # mask = tril(ones(B,S,S)); mask[:, :len_s1, :len_s1] = 1  (built in-kernel)
        seq_out = bert_encode(params, x, n_heads, len_s1, causal=True)   # (B*S, H)
        y_padding = jnp.full((B, len_s1), -1, dtype=jnp.int32)
        y_full = jnp.concatenate([y_padding, y.astype(jnp.int32)], axis=1)  # (B, S)
        return classify_ce(seq_out, params["classify_w"], params["classify_b"],
                           y_full.reshape(-1))
    else:
        # Reference output depends only on the un-masked re-run of BERT + classify
        # + softmax; the masked pass is dead code and is skipped here.
        seq_out = bert_encode(params, x, n_heads, len_s1, causal=False)
        probs = classify_softmax(seq_out, params["classify_w"], params["classify_b"],
                                 vocab_size)
        return probs.reshape(B, S, vocab_size)


# ----------------------------------- main --------------------------------------

if __name__ == "__main__":
    vocab_size, hidden, n_heads, intermediate, max_pos = 64, 32, 4, 64, 16
    num_layers = 1
    B, S, len_s1 = 2, 8, 3

    key = jax.random.PRNGKey(0)
    kp, kx, ky = jax.random.split(key, 3)
    raw_params = init_params(kp, vocab_size, hidden, intermediate, max_pos, num_layers)
    params = prepare_params(raw_params, n_heads)   # one-time bf16 / scale-fold / V-pad prep
    x = jax.random.randint(kx, (B, S), 0, vocab_size, dtype=jnp.int32)
    y = jax.random.randint(ky, (B, S - len_s1), 0, vocab_size, dtype=jnp.int32)

    train_fn = jax.jit(
        lambda p, xx, yy: language_model_forward(p, xx, len_s1, n_heads, vocab_size, y=yy))
    infer_fn = jax.jit(
        lambda p, xx: language_model_forward(p, xx, len_s1, n_heads, vocab_size, y=None))

    loss = train_fn(params, x, y)        # scalar CE loss (ignore_index = -1, mean over valid)
    probs = infer_fn(params, x)          # (B, S, vocab)

    jax.block_until_ready((loss, probs))
    assert probs.shape == (B, S, vocab_size)
    assert bool(jnp.isfinite(loss))
    print("KERNEL_OK")
</pallas_src>

<mosaic_0001>
module attributes {stable_mosaic.version = 11 : i64} {
  func.func @_embed_ln_kernel(%arg0: i32, %arg1: memref<1x8x32xf32, #tpu.memory_space<vmem>>, %arg2: memref<1x32xf32, #tpu.memory_space<vmem>>, %arg3: memref<1x32xf32, #tpu.memory_space<vmem>>, %arg4: memref<1x8x32xf32, #tpu.memory_space<vmem>>) attributes {dimension_semantics = [#tpu.dimension_semantics<parallel>], iteration_bounds = array<i64: 2>, scalar_prefetch = 0 : i64, scratch_operands = 0 : i64, tpu.core_type = #tpu.core_type<tc>, window_params = [{transform_indices = @transform_0, window_bounds = array<i64: 1, 8, 32>}, {pipeline_mode = #tpu.pipeline_mode<synchronous>, transform_indices = @transform_1, window_bounds = array<i64: 1, 32>}, {pipeline_mode = #tpu.pipeline_mode<synchronous>, transform_indices = @transform_2, window_bounds = array<i64: 1, 32>}, {transform_indices = @transform_3, window_bounds = array<i64: 1, 8, 32>}]} {
    %c0 = arith.constant 0 : index
    %c0_0 = arith.constant 0 : index
    %c0_1 = arith.constant 0 : index
    %0 = vector.load %arg1[%c0, %c0_0, %c0_1] : memref<1x8x32xf32, #tpu.memory_space<vmem>>, vector<1x8x32xf32>
    %1 = vector.shape_cast %0 : vector<1x8x32xf32> to vector<8x32xf32>
    %c0_2 = arith.constant 0 : index
    %c0_3 = arith.constant 0 : index
    %2 = vector.load %arg2[%c0_2, %c0_3] : memref<1x32xf32, #tpu.memory_space<vmem>>, vector<1x32xf32>
    %c0_4 = arith.constant 0 : index
    %c0_5 = arith.constant 0 : index
    %3 = vector.load %arg3[%c0_4, %c0_5] : memref<1x32xf32, #tpu.memory_space<vmem>>, vector<1x32xf32>
    %cst = arith.constant dense<0.000000e+00> : vector<8xf32>
    %4 = vector.multi_reduction <add>, %1, %cst [1] : vector<8x32xf32> to vector<8xf32>
    %5 = vector.shape_cast %4 : vector<8xf32> to vector<8x1xf32>
    %cst_6 = arith.constant 3.200000e+01 : f32
    %6 = vector.broadcast %cst_6 : f32 to vector<8x1xf32>
    %7 = arith.divf %5, %6 : vector<8x1xf32>
    %8 = vector.broadcast %7 : vector<8x1xf32> to vector<8x32xf32>
    %9 = arith.subf %1, %8 : vector<8x32xf32>
    %10 = arith.mulf %9, %9 : vector<8x32xf32>
    %cst_7 = arith.constant dense<0.000000e+00> : vector<8xf32>
    %11 = vector.multi_reduction <add>, %10, %cst_7 [1] : vector<8x32xf32> to vector<8xf32>
    %12 = vector.shape_cast %11 : vector<8xf32> to vector<8x1xf32>
    %cst_8 = arith.constant 3.200000e+01 : f32
    %13 = vector.broadcast %cst_8 : f32 to vector<8x1xf32>
    %14 = arith.divf %12, %13 : vector<8x1xf32>
    %15 = vector.broadcast %7 : vector<8x1xf32> to vector<8x32xf32>
    %16 = arith.subf %1, %15 : vector<8x32xf32>
    %cst_9 = arith.constant 9.99999996E-13 : f32
    %17 = vector.broadcast %cst_9 : f32 to vector<8x1xf32>
    %18 = arith.addf %14, %17 : vector<8x1xf32>
    %19 = math.rsqrt %18 : vector<8x1xf32>
    %20 = vector.broadcast %19 : vector<8x1xf32> to vector<8x32xf32>
    %21 = arith.mulf %16, %20 : vector<8x32xf32>
    %22 = vector.broadcast %2 : vector<1x32xf32> to vector<8x32xf32>
    %23 = arith.mulf %21, %22 : vector<8x32xf32>
    %24 = vector.broadcast %3 : vector<1x32xf32> to vector<8x32xf32>
    %25 = arith.addf %23, %24 : vector<8x32xf32>
    %c0_10 = arith.constant 0 : index
    %c0_11 = arith.constant 0 : index
    %c0_12 = arith.constant 0 : index
    %26 = vector.load %arg4[%c0_10, %c0_11, %c0_12] : memref<1x8x32xf32, #tpu.memory_space<vmem>>, vector<1x8x32xf32>
    %27 = vector.shape_cast %26 : vector<1x8x32xf32> to vector<8x32xf32>
    %28 = vector.shape_cast %25 : vector<8x32xf32> to vector<1x8x32xf32>
    tpu.vector_store %arg4[%c0_10, %c0_11, %c0_12], %28 {strides = array<i32>} : memref<1x8x32xf32, #tpu.memory_space<vmem>>, vector<1x8x32xf32>,
    return
  }
  func.func @transform_0(%arg0: i32) -> (i32, i32, i32) {
    %c0_i32 = arith.constant 0 : i32
    %c0_i32_0 = arith.constant 0 : i32
    %c0_i32_1 = arith.constant 0 : i32
    return %arg0, %c0_i32, %c0_i32_0 : i32, i32, i32
  }
  func.func @transform_1(%arg0: i32) -> (i32, i32) {
    %c0_i32 = arith.constant 0 : i32
    %c0_i32_0 = arith.constant 0 : i32
    %c0_i32_1 = arith.constant 0 : i32
    return %c0_i32, %c0_i32_0 : i32, i32
  }
  func.func @transform_2(%arg0: i32) -> (i32, i32) {
    %c0_i32 = arith.constant 0 : i32
    %c0_i32_0 = arith.constant 0 : i32
    %c0_i32_1 = arith.constant 0 : i32
    return %c0_i32, %c0_i32_0 : i32, i32
  }
  func.func @transform_3(%arg0: i32) -> (i32, i32, i32) {
    %c0_i32 = arith.constant 0 : i32
    %c0_i32_0 = arith.constant 0 : i32
    %c0_i32_1 = arith.constant 0 : i32
    return %arg0, %c0_i32, %c0_i32_0 : i32, i32, i32
  }
}

module attributes {stable_mosaic.version = 11 : i64} {
  func.func @_encoder_layer_kernel(%arg0: i32, %arg1: i32, %arg2: memref<1x8x32xf32, #tpu.memory_space<vmem>>, %arg3: memref<1x8x32xf32, #tpu.memory_space<vmem>>, %arg4: memref<32x32xbf16, #tpu.memory_space<vmem>>, %arg5: memref<1x32xf32, #tpu.memory_space<vmem>>, %arg6: memref<32x64xbf16, #tpu.memory_space<vmem>>, %arg7: memref<1x64xf32, #tpu.memory_space<vmem>>, %arg8: memref<32x32xbf16, #tpu.memory_space<vmem>>, %arg9: memref<1x32xf32, #tpu.memory_space<vmem>>, %arg10: memref<1x32xf32, #tpu.memory_space<vmem>>, %arg11: memref<1x32xf32, #tpu.memory_space<vmem>>, %arg12: memref<32x64xbf16, #tpu.memory_space<vmem>>, %arg13: memref<1x64xf32, #tpu.memory_space<vmem>>, %arg14: memref<64x32xbf16, #tpu.memory_space<vmem>>, %arg15: memref<1x32xf32, #tpu.memory_space<vmem>>, %arg16: memref<1x32xf32, #tpu.memory_space<vmem>>, %arg17: memref<1x32xf32, #tpu.memory_space<vmem>>, %arg18: memref<1x8x32xf32, #tpu.memory_space<vmem>>, %arg19: memref<8x32xf32, #tpu.memory_space<vmem>>) attributes {dimension_semantics = [#tpu.dimension_semantics<parallel>, #tpu.dimension_semantics<parallel>], iteration_bounds = array<i64: 2, 1>, scalar_prefetch = 0 : i64, scratch_operands = 1 : i64, tpu.core_type = #tpu.core_type<tc>, window_params = [{transform_indices = @transform_0, window_bounds = array<i64: 1, 8, 32>}, {transform_indices = @transform_1, window_bounds = array<i64: 1, 8, 32>}, {pipeline_mode = #tpu.pipeline_mode<synchronous>, transform_indices = @transform_2, window_bounds = array<i64: 32, 32>}, {pipeline_mode = #tpu.pipeline_mode<synchronous>, transform_indices = @transform_3, window_bounds = array<i64: 1, 32>}, {pipeline_mode = #tpu.pipeline_mode<synchronous>, transform_indices = @transform_4, window_bounds = array<i64: 32, 64>}, {pipeline_mode = #tpu.pipeline_mode<synchronous>, transform_indices = @transform_5, window_bounds = array<i64: 1, 64>}, {pipeline_mode = #tpu.pipeline_mode<synchronous>, transform_indices = @transform_6, window_bounds = array<i64: 32, 32>}, {pipeline_mode = #tpu.pipeline_mode<synchronous>, transform_indices = @transform_7, window_bounds = array<i64: 1, 32>}, {pipeline_mode = #tpu.pipeline_mode<synchronous>, transform_indices = @transform_8, window_bounds = array<i64: 1, 32>}, {pipeline_mode = #tpu.pipeline_mode<synchronous>, transform_indices = @transform_9, window_bounds = array<i64: 1, 32>}, {pipeline_mode = #tpu.pipeline_mode<synchronous>, transform_indices = @transform_10, window_bounds = array<i64: 32, 64>}, {pipeline_mode = #tpu.pipeline_mode<synchronous>, transform_indices = @transform_11, window_bounds = array<i64: 1, 64>}, {pipeline_mode = #tpu.pipeline_mode<synchronous>, transform_indices = @transform_12, window_bounds = array<i64: 64, 32>}, {pipeline_mode = #tpu.pipeline_mode<synchronous>, transform_indices = @transform_13, window_bounds = array<i64: 1, 32>}, {pipeline_mode = #tpu.pipeline_mode<synchronous>, transform_indices = @transform_14, window_bounds = array<i64: 1, 32>}, {pipeline_mode = #tpu.pipeline_mode<synchronous>, transform_indices = @transform_15, window_bounds = array<i64: 1, 32>}, {transform_indices = @transform_16, window_bounds = array<i64: 1, 8, 32>}]} {
    %c0 = arith.constant 0 : index
    %c0_0 = arith.constant 0 : index
    %c0_1 = arith.constant 0 : index
    %0 = vector.load %arg2[%c0, %c0_0, %c0_1] : memref<1x8x32xf32, #tpu.memory_space<vmem>>, vector<1x8x32xf32>
    %1 = vector.shape_cast %0 : vector<1x8x32xf32> to vector<8x32xf32>
    %c0_2 = arith.constant 0 : index
    %c0_3 = arith.constant 0 : index
    %c0_4 = arith.constant 0 : index
    %2 = vector.load %arg3[%c0_2, %c0_3, %c0_4] : memref<1x8x32xf32, #tpu.memory_space<vmem>>, vector<1x8x32xf32>
    %3 = vector.shape_cast %2 : vector<1x8x32xf32> to vector<8x32xf32>
    %4 = arith.truncf %1 : vector<8x32xf32> to vector<8x32xbf16>
    %c0_5 = arith.constant 0 : index
    %c0_6 = arith.constant 0 : index
    %5 = vector.load %arg4[%c0_5, %c0_6] : memref<32x32xbf16, #tpu.memory_space<vmem>>, vector<32x32xbf16>
    %cst = arith.constant dense<0.000000e+00> : vector<8x32xf32>
    %6 = tpu.matmul %4, %5, %cst {dimension_numbers = #tpu.dot_dimension_numbers<[1], [0], [0], [1], [0, 0, 1, 1], [], []>} : vector<8x32xbf16>, vector<32x32xbf16>, vector<8x32xf32> -> vector<8x32xf32>
    %c0_7 = arith.constant 0 : index
    %c0_8 = arith.constant 0 : index
    %7 = vector.load %arg5[%c0_7, %c0_8] : memref<1x32xf32, #tpu.memory_space<vmem>>, vector<1x32xf32>
    %8 = vector.broadcast %7 : vector<1x32xf32> to vector<8x32xf32>
    %9 = arith.addf %6, %8 : vector<8x32xf32>
    %10 = arith.truncf %3 : vector<8x32xf32> to vector<8x32xbf16>
    %c0_9 = arith.constant 0 : index
    %c0_10 = arith.constant 0 : index
    %11 = vector.load %arg6[%c0_9, %c0_10] : memref<32x64xbf16, #tpu.memory_space<vmem>>, vector<32x64xbf16>
    %cst_11 = arith.constant dense<0.000000e+00> : vector<8x64xf32>
    %12 = tpu.matmul %10, %11, %cst_11 {dimension_numbers = #tpu.dot_dimension_numbers<[1], [0], [0], [1], [0, 0, 1, 1], [], []>} : vector<8x32xbf16>, vector<32x64xbf16>, vector<8x64xf32> -> vector<8x64xf32>
    %c0_12 = arith.constant 0 : index
    %c0_13 = arith.constant 0 : index
    %13 = vector.load %arg7[%c0_12, %c0_13] : memref<1x64xf32, #tpu.memory_space<vmem>>, vector<1x64xf32>
    %14 = vector.broadcast %13 : vector<1x64xf32> to vector<8x64xf32>
    %15 = arith.addf %12, %14 : vector<8x64xf32>
    %16 = vector.extract_strided_slice %15 {offsets = [0, 0], sizes = [8, 32], strides = [1, 1]} : vector<8x64xf32> to vector<8x32xf32>
    %17 = vector.extract_strided_slice %15 {offsets = [0, 32], sizes = [8, 32], strides = [1, 1]} : vector<8x64xf32> to vector<8x32xf32>
    %18 = tpu.iota {dimensions = array<i32: 0>} : vector<8x8xi32>
    %c8_i32 = arith.constant 8 : i32
    %19 = arith.muli %arg1, %c8_i32 : i32
    %20 = vector.broadcast %19 : i32 to vector<8x8xi32>
    %21 = arith.addi %18, %20 : vector<8x8xi32>
    %22 = tpu.iota {dimensions = array<i32: 1>} : vector<8x8xi32>
    %23 = arith.cmpi sle, %22, %21 : vector<8x8xi32>
    %c3_i32 = arith.constant 3 : i32
    %24 = vector.broadcast %c3_i32 : i32 to vector<8x8xi32>
    %25 = arith.cmpi slt, %21, %24 : vector<8x8xi32>
    %c3_i32_14 = arith.constant 3 : i32
    %26 = vector.broadcast %c3_i32_14 : i32 to vector<8x8xi32>
    %27 = arith.cmpi slt, %22, %26 : vector<8x8xi32>
    %28 = arith.andi %25, %27 : vector<8x8xi1>
    %29 = arith.ori %23, %28 : vector<8x8xi1>
    %cst_15 = arith.constant 0.000000e+00 : f32
    %cst_16 = arith.constant -1.000000e+04 : f32
    %30 = vector.broadcast %cst_15 : f32 to vector<8x8xf32>
    %31 = vector.broadcast %cst_16 : f32 to vector<8x8xf32>
    %32 = arith.select %29, %30, %31 : vector<8x8xi1>, vector<8x8xf32>
    %33 = vector.extract_strided_slice %9 {offsets = [0, 0], sizes = [8, 8], strides = [1, 1]} : vector<8x32xf32> to vector<8x8xf32>
    %34 = arith.truncf %33 : vector<8x8xf32> to vector<8x8xbf16>
    %35 = vector.extract_strided_slice %16 {offsets = [0, 0], sizes = [8, 8], strides = [1, 1]} : vector<8x32xf32> to vector<8x8xf32>
    %36 = arith.truncf %35 : vector<8x8xf32> to vector<8x8xbf16>
    %37 = vector.extract_strided_slice %17 {offsets = [0, 0], sizes = [8, 8], strides = [1, 1]} : vector<8x32xf32> to vector<8x8xf32>
    %38 = arith.truncf %37 : vector<8x8xf32> to vector<8x8xbf16>
    %cst_17 = arith.constant dense<0.000000e+00> : vector<8x8xf32>
    %39 = tpu.matmul %34, %36, %cst_17 {dimension_numbers = #tpu.dot_dimension_numbers<[1], [1], [0], [0], [0, 0, 1, 0], [], []>} : vector<8x8xbf16>, vector<8x8xbf16>, vector<8x8xf32> -> vector<8x8xf32>
    %40 = arith.addf %39, %32 : vector<8x8xf32>
    %cst_18 = arith.constant dense<0xFF800000> : vector<8xf32>
    %41 = vector.multi_reduction <maximumf>, %40, %cst_18 [1] : vector<8x8xf32> to vector<8xf32>
    %42 = vector.shape_cast %41 : vector<8xf32> to vector<8x1xf32>
    %43 = vector.broadcast %42 : vector<8x1xf32> to vector<8x8xf32>
    %44 = arith.subf %40, %43 : vector<8x8xf32>
    %45 = math.exp %44 : vector<8x8xf32>
    %cst_19 = arith.constant dense<0.000000e+00> : vector<8xf32>
    %46 = vector.multi_reduction <add>, %45, %cst_19 [1] : vector<8x8xf32> to vector<8xf32>
    %47 = vector.shape_cast %46 : vector<8xf32> to vector<8x1xf32>
    %48 = tpu.reciprocal %47 {approx = true} : vector<8x1xf32> -> vector<8x1xf32>
    %49 = vector.broadcast %48 : vector<8x1xf32> to vector<8x8xf32>
    %50 = arith.mulf %45, %49 : vector<8x8xf32>
    %51 = arith.truncf %50 : vector<8x8xf32> to vector<8x8xbf16>
    %cst_20 = arith.constant dense<0.000000e+00> : vector<8x8xf32>
    %52 = tpu.matmul %51, %38, %cst_20 {dimension_numbers = #tpu.dot_dimension_numbers<[1], [0], [0], [1], [0, 0, 1, 1], [], []>} : vector<8x8xbf16>, vector<8x8xbf16>, vector<8x8xf32> -> vector<8x8xf32>
    %c0_21 = arith.constant 0 : index
    %c0_22 = arith.constant 0 : index
    %53 = vector.load %arg19[%c0_21, %c0_22] : memref<8x32xf32, #tpu.memory_space<vmem>>, vector<8x8xf32>
    tpu.vector_store %arg19[%c0_21, %c0_22], %52 {strides = array<i32>} : memref<8x32xf32, #tpu.memory_space<vmem>>, vector<8x8xf32>,
    %54 = vector.extract_strided_slice %9 {offsets = [0, 8], sizes = [8, 8], strides = [1, 1]} : vector<8x32xf32> to vector<8x8xf32>
    %55 = arith.truncf %54 : vector<8x8xf32> to vector<8x8xbf16>
    %56 = vector.extract_strided_slice %16 {offsets = [0, 8], sizes = [8, 8], strides = [1, 1]} : vector<8x32xf32> to vector<8x8xf32>
    %57 = arith.truncf %56 : vector<8x8xf32> to vector<8x8xbf16>
    %58 = vector.extract_strided_slice %17 {offsets = [0, 8], sizes = [8, 8], strides = [1, 1]} : vector<8x32xf32> to vector<8x8xf32>
    %59 = arith.truncf %58 : vector<8x8xf32> to vector<8x8xbf16>
    %cst_23 = arith.constant dense<0.000000e+00> : vector<8x8xf32>
    %60 = tpu.matmul %55, %57, %cst_23 {dimension_numbers = #tpu.dot_dimension_numbers<[1], [1], [0], [0], [0, 0, 1, 0], [], []>} : vector<8x8xbf16>, vector<8x8xbf16>, vector<8x8xf32> -> vector<8x8xf32>
    %61 = arith.addf %60, %32 : vector<8x8xf32>
    %cst_24 = arith.constant dense<0xFF800000> : vector<8xf32>
    %62 = vector.multi_reduction <maximumf>, %61, %cst_24 [1] : vector<8x8xf32> to vector<8xf32>
    %63 = vector.shape_cast %62 : vector<8xf32> to vector<8x1xf32>
    %64 = vector.broadcast %63 : vector<8x1xf32> to vector<8x8xf32>
    %65 = arith.subf %61, %64 : vector<8x8xf32>
    %66 = math.exp %65 : vector<8x8xf32>
    %cst_25 = arith.constant dense<0.000000e+00> : vector<8xf32>
    %67 = vector.multi_reduction <add>, %66, %cst_25 [1] : vector<8x8xf32> to vector<8xf32>
    %68 = vector.shape_cast %67 : vector<8xf32> to vector<8x1xf32>
    %69 = tpu.reciprocal %68 {approx = true} : vector<8x1xf32> -> vector<8x1xf32>
    %70 = vector.broadcast %69 : vector<8x1xf32> to vector<8x8xf32>
    %71 = arith.mulf %66, %70 : vector<8x8xf32>
    %72 = arith.truncf %71 : vector<8x8xf32> to vector<8x8xbf16>
    %cst_26 = arith.constant dense<0.000000e+00> : vector<8x8xf32>
    %73 = tpu.matmul %72, %59, %cst_26 {dimension_numbers = #tpu.dot_dimension_numbers<[1], [0], [0], [1], [0, 0, 1, 1], [], []>} : vector<8x8xbf16>, vector<8x8xbf16>, vector<8x8xf32> -> vector<8x8xf32>
    %c0_27 = arith.constant 0 : index
    %c8 = arith.constant 8 : index
    %74 = vector.load %arg19[%c0_27, %c8] : memref<8x32xf32, #tpu.memory_space<vmem>>, vector<8x8xf32>
    tpu.vector_store %arg19[%c0_27, %c8], %73 {strides = array<i32>} : memref<8x32xf32, #tpu.memory_space<vmem>>, vector<8x8xf32>,
    %75 = vector.extract_strided_slice %9 {offsets = [0, 16], sizes = [8, 8], strides = [1, 1]} : vector<8x32xf32> to vector<8x8xf32>
    %76 = arith.truncf %75 : vector<8x8xf32> to vector<8x8xbf16>
    %77 = vector.extract_strided_slice %16 {offsets = [0, 16], sizes = [8, 8], strides = [1, 1]} : vector<8x32xf32> to vector<8x8xf32>
    %78 = arith.truncf %77 : vector<8x8xf32> to vector<8x8xbf16>
    %79 = vector.extract_strided_slice %17 {offsets = [0, 16], sizes = [8, 8], strides = [1, 1]} : vector<8x32xf32> to vector<8x8xf32>
    %80 = arith.truncf %79 : vector<8x8xf32> to vector<8x8xbf16>
    %cst_28 = arith.constant dense<0.000000e+00> : vector<8x8xf32>
    %81 = tpu.matmul %76, %78, %cst_28 {dimension_numbers = #tpu.dot_dimension_numbers<[1], [1], [0], [0], [0, 0, 1, 0], [], []>} : vector<8x8xbf16>, vector<8x8xbf16>, vector<8x8xf32> -> vector<8x8xf32>
    %82 = arith.addf %81, %32 : vector<8x8xf32>
    %cst_29 = arith.constant dense<0xFF800000> : vector<8xf32>
    %83 = vector.multi_reduction <maximumf>, %82, %cst_29 [1] : vector<8x8xf32> to vector<8xf32>
    %84 = vector.shape_cast %83 : vector<8xf32> to vector<8x1xf32>
    %85 = vector.broadcast %84 : vector<8x1xf32> to vector<8x8xf32>
    %86 = arith.subf %82, %85 : vector<8x8xf32>
    %87 = math.exp %86 : vector<8x8xf32>
    %cst_30 = arith.constant dense<0.000000e+00> : vector<8xf32>
    %88 = vector.multi_reduction <add>, %87, %cst_30 [1] : vector<8x8xf32> to vector<8xf32>
    %89 = vector.shape_cast %88 : vector<8xf32> to vector<8x1xf32>
    %90 = tpu.reciprocal %89 {approx = true} : vector<8x1xf32> -> vector<8x1xf32>
    %91 = vector.broadcast %90 : vector<8x1xf32> to vector<8x8xf32>
    %92 = arith.mulf %87, %91 : vector<8x8xf32>
    %93 = arith.truncf %92 : vector<8x8xf32> to vector<8x8xbf16>
    %cst_31 = arith.constant dense<0.000000e+00> : vector<8x8xf32>
    %94 = tpu.matmul %93, %80, %cst_31 {dimension_numbers = #tpu.dot_dimension_numbers<[1], [0], [0], [1], [0, 0, 1, 1], [], []>} : vector<8x8xbf16>, vector<8x8xbf16>, vector<8x8xf32> -> vector<8x8xf32>
    %c0_32 = arith.constant 0 : index
    %c16 = arith.constant 16 : index
    %95 = vector.load %arg19[%c0_32, %c16] : memref<8x32xf32, #tpu.memory_space<vmem>>, vector<8x8xf32>
    tpu.vector_store %arg19[%c0_32, %c16], %94 {strides = array<i32>} : memref<8x32xf32, #tpu.memory_space<vmem>>, vector<8x8xf32>,
    %96 = vector.extract_strided_slice %9 {offsets = [0, 24], sizes = [8, 8], strides = [1, 1]} : vector<8x32xf32> to vector<8x8xf32>
    %97 = arith.truncf %96 : vector<8x8xf32> to vector<8x8xbf16>
    %98 = vector.extract_strided_slice %16 {offsets = [0, 24], sizes = [8, 8], strides = [1, 1]} : vector<8x32xf32> to vector<8x8xf32>
    %99 = arith.truncf %98 : vector<8x8xf32> to vector<8x8xbf16>
    %100 = vector.extract_strided_slice %17 {offsets = [0, 24], sizes = [8, 8], strides = [1, 1]} : vector<8x32xf32> to vector<8x8xf32>
    %101 = arith.truncf %100 : vector<8x8xf32> to vector<8x8xbf16>
    %cst_33 = arith.constant dense<0.000000e+00> : vector<8x8xf32>
    %102 = tpu.matmul %97, %99, %cst_33 {dimension_numbers = #tpu.dot_dimension_numbers<[1], [1], [0], [0], [0, 0, 1, 0], [], []>} : vector<8x8xbf16>, vector<8x8xbf16>, vector<8x8xf32> -> vector<8x8xf32>
    %103 = arith.addf %102, %32 : vector<8x8xf32>
    %cst_34 = arith.constant dense<0xFF800000> : vector<8xf32>
    %104 = vector.multi_reduction <maximumf>, %103, %cst_34 [1] : vector<8x8xf32> to vector<8xf32>
    %105 = vector.shape_cast %104 : vector<8xf32> to vector<8x1xf32>
    %106 = vector.broadcast %105 : vector<8x1xf32> to vector<8x8xf32>
    %107 = arith.subf %103, %106 : vector<8x8xf32>
    %108 = math.exp %107 : vector<8x8xf32>
    %cst_35 = arith.constant dense<0.000000e+00> : vector<8xf32>
    %109 = vector.multi_reduction <add>, %108, %cst_35 [1] : vector<8x8xf32> to vector<8xf32>
    %110 = vector.shape_cast %109 : vector<8xf32> to vector<8x1xf32>
    %111 = tpu.reciprocal %110 {approx = true} : vector<8x1xf32> -> vector<8x1xf32>
    %112 = vector.broadcast %111 : vector<8x1xf32> to vector<8x8xf32>
    %113 = arith.mulf %108, %112 : vector<8x8xf32>
    %114 = arith.truncf %113 : vector<8x8xf32> to vector<8x8xbf16>
    %cst_36 = arith.constant dense<0.000000e+00> : vector<8x8xf32>
    %115 = tpu.matmul %114, %101, %cst_36 {dimension_numbers = #tpu.dot_dimension_numbers<[1], [0], [0], [1], [0, 0, 1, 1], [], []>} : vector<8x8xbf16>, vector<8x8xbf16>, vector<8x8xf32> -> vector<8x8xf32>
    %c0_37 = arith.constant 0 : index
    %c24 = arith.constant 24 : index
    %116 = vector.load %arg19[%c0_37, %c24] : memref<8x32xf32, #tpu.memory_space<vmem>>, vector<8x8xf32>
    tpu.vector_store %arg19[%c0_37, %c24], %115 {strides = array<i32>} : memref<8x32xf32, #tpu.memory_space<vmem>>, vector<8x8xf32>,
    %c0_38 = arith.constant 0 : index
    %c0_39 = arith.constant 0 : index
    %117 = vector.load %arg19[%c0_38, %c0_39] : memref<8x32xf32, #tpu.memory_space<vmem>>, vector<8x32xf32>
    %118 = arith.truncf %117 : vector<8x32xf32> to vector<8x32xbf16>
    %c0_40 = arith.constant 0 : index
    %c0_41 = arith.constant 0 : index
    %119 = vector.load %arg8[%c0_40, %c0_41] : memref<32x32xbf16, #tpu.memory_space<vmem>>, vector<32x32xbf16>
    %cst_42 = arith.constant dense<0.000000e+00> : vector<8x32xf32>
    %120 = tpu.matmul %118, %119, %cst_42 {dimension_numbers = #tpu.dot_dimension_numbers<[1], [0], [0], [1], [0, 0, 1, 1], [], []>} : vector<8x32xbf16>, vector<32x32xbf16>, vector<8x32xf32> -> vector<8x32xf32>
    %c0_43 = arith.constant 0 : index
    %c0_44 = arith.constant 0 : index
    %121 = vector.load %arg9[%c0_43, %c0_44] : memref<1x32xf32, #tpu.memory_space<vmem>>, vector<1x32xf32>
    %122 = vector.broadcast %121 : vector<1x32xf32> to vector<8x32xf32>
    %123 = arith.addf %120, %122 : vector<8x32xf32>
    %124 = arith.addf %1, %123 : vector<8x32xf32>
    %c0_45 = arith.constant 0 : index
    %c0_46 = arith.constant 0 : index
    %125 = vector.load %arg10[%c0_45, %c0_46] : memref<1x32xf32, #tpu.memory_space<vmem>>, vector<1x32xf32>
    %c0_47 = arith.constant 0 : index
    %c0_48 = arith.constant 0 : index
    %126 = vector.load %arg11[%c0_47, %c0_48] : memref<1x32xf32, #tpu.memory_space<vmem>>, vector<1x32xf32>
    %cst_49 = arith.constant dense<0.000000e+00> : vector<8xf32>
    %127 = vector.multi_reduction <add>, %124, %cst_49 [1] : vector<8x32xf32> to vector<8xf32>
    %128 = vector.shape_cast %127 : vector<8xf32> to vector<8x1xf32>
    %cst_50 = arith.constant 3.200000e+01 : f32
    %129 = vector.broadcast %cst_50 : f32 to vector<8x1xf32>
    %130 = arith.divf %128, %129 : vector<8x1xf32>
    %131 = vector.broadcast %130 : vector<8x1xf32> to vector<8x32xf32>
    %132 = arith.subf %124, %131 : vector<8x32xf32>
    %133 = arith.mulf %132, %132 : vector<8x32xf32>
    %cst_51 = arith.constant dense<0.000000e+00> : vector<8xf32>
    %134 = vector.multi_reduction <add>, %133, %cst_51 [1] : vector<8x32xf32> to vector<8xf32>
    %135 = vector.shape_cast %134 : vector<8xf32> to vector<8x1xf32>
    %cst_52 = arith.constant 3.200000e+01 : f32
    %136 = vector.broadcast %cst_52 : f32 to vector<8x1xf32>
    %137 = arith.divf %135, %136 : vector<8x1xf32>
    %138 = vector.broadcast %130 : vector<8x1xf32> to vector<8x32xf32>
    %139 = arith.subf %124, %138 : vector<8x32xf32>
    %cst_53 = arith.constant 9.99999996E-13 : f32
    %140 = vector.broadcast %cst_53 : f32 to vector<8x1xf32>
    %141 = arith.addf %137, %140 : vector<8x1xf32>
    %142 = math.rsqrt %141 : vector<8x1xf32>
    %143 = vector.broadcast %142 : vector<8x1xf32> to vector<8x32xf32>
    %144 = arith.mulf %139, %143 : vector<8x32xf32>
    %145 = vector.broadcast %125 : vector<1x32xf32> to vector<8x32xf32>
    %146 = arith.mulf %144, %145 : vector<8x32xf32>
    %147 = vector.broadcast %126 : vector<1x32xf32> to vector<8x32xf32>
    %148 = arith.addf %146, %147 : vector<8x32xf32>
    %149 = arith.truncf %148 : vector<8x32xf32> to vector<8x32xbf16>
    %c0_54 = arith.constant 0 : index
    %c0_55 = arith.constant 0 : index
    %150 = vector.load %arg12[%c0_54, %c0_55] : memref<32x64xbf16, #tpu.memory_space<vmem>>, vector<32x64xbf16>
    %cst_56 = arith.constant dense<0.000000e+00> : vector<8x64xf32>
    %151 = tpu.matmul %149, %150, %cst_56 {dimension_numbers = #tpu.dot_dimension_numbers<[1], [0], [0], [1], [0, 0, 1, 1], [], []>} : vector<8x32xbf16>, vector<32x64xbf16>, vector<8x64xf32> -> vector<8x64xf32>
    %c0_57 = arith.constant 0 : index
    %c0_58 = arith.constant 0 : index
    %152 = vector.load %arg13[%c0_57, %c0_58] : memref<1x64xf32, #tpu.memory_space<vmem>>, vector<1x64xf32>
    %153 = vector.broadcast %152 : vector<1x64xf32> to vector<8x64xf32>
    %154 = arith.addf %151, %153 : vector<8x64xf32>
    %cst_59 = arith.constant 5.000000e-01 : f32
    %155 = vector.broadcast %cst_59 : f32 to vector<8x64xf32>
    %156 = arith.mulf %155, %154 : vector<8x64xf32>
    %cst_60 = arith.constant 4.471500e-02 : f32
    %157 = vector.broadcast %cst_60 : f32 to vector<8x64xf32>
    %158 = arith.mulf %157, %154 : vector<8x64xf32>
    %159 = arith.mulf %158, %154 : vector<8x64xf32>
    %160 = arith.mulf %159, %154 : vector<8x64xf32>
    %161 = arith.addf %154, %160 : vector<8x64xf32>
    %cst_61 = arith.constant 0.797884583 : f32
    %162 = vector.broadcast %cst_61 : f32 to vector<8x64xf32>
    %163 = arith.mulf %162, %161 : vector<8x64xf32>
    %164 = math.tanh %163 : vector<8x64xf32>
    %cst_62 = arith.constant 1.000000e+00 : f32
    %165 = vector.broadcast %cst_62 : f32 to vector<8x64xf32>
    %166 = arith.addf %165, %164 : vector<8x64xf32>
    %167 = arith.mulf %156, %166 : vector<8x64xf32>
    %168 = arith.truncf %167 : vector<8x64xf32> to vector<8x64xbf16>
    %c0_63 = arith.constant 0 : index
    %c0_64 = arith.constant 0 : index
    %169 = vector.load %arg14[%c0_63, %c0_64] : memref<64x32xbf16, #tpu.memory_space<vmem>>, vector<64x32xbf16>
    %cst_65 = arith.constant dense<0.000000e+00> : vector<8x32xf32>
    %170 = tpu.matmul %168, %169, %cst_65 {dimension_numbers = #tpu.dot_dimension_numbers<[1], [0], [0], [1], [0, 0, 1, 1], [], []>} : vector<8x64xbf16>, vector<64x32xbf16>, vector<8x32xf32> -> vector<8x32xf32>
    %c0_66 = arith.constant 0 : index
    %c0_67 = arith.constant 0 : index
    %171 = vector.load %arg15[%c0_66, %c0_67] : memref<1x32xf32, #tpu.memory_space<vmem>>, vector<1x32xf32>
    %172 = vector.broadcast %171 : vector<1x32xf32> to vector<8x32xf32>
    %173 = arith.addf %170, %172 : vector<8x32xf32>
    %174 = arith.addf %148, %173 : vector<8x32xf32>
    %c0_68 = arith.constant 0 : index
    %c0_69 = arith.constant 0 : index
    %175 = vector.load %arg16[%c0_68, %c0_69] : memref<1x32xf32, #tpu.memory_space<vmem>>, vector<1x32xf32>
    %c0_70 = arith.constant 0 : index
    %c0_71 = arith.constant 0 : index
    %176 = vector.load %arg17[%c0_70, %c0_71] : memref<1x32xf32, #tpu.memory_space<vmem>>, vector<1x32xf32>
    %cst_72 = arith.constant dense<0.000000e+00> : vector<8xf32>
    %177 = vector.multi_reduction <add>, %174, %cst_72 [1] : vector<8x32xf32> to vector<8xf32>
    %178 = vector.shape_cast %177 : vector<8xf32> to vector<8x1xf32>
    %cst_73 = arith.constant 3.200000e+01 : f32
    %179 = vector.broadcast %cst_73 : f32 to vector<8x1xf32>
    %180 = arith.divf %178, %179 : vector<8x1xf32>
    %181 = vector.broadcast %180 : vector<8x1xf32> to vector<8x32xf32>
    %182 = arith.subf %174, %181 : vector<8x32xf32>
    %183 = arith.mulf %182, %182 : vector<8x32xf32>
    %cst_74 = arith.constant dense<0.000000e+00> : vector<8xf32>
    %184 = vector.multi_reduction <add>, %183, %cst_74 [1] : vector<8x32xf32> to vector<8xf32>
    %185 = vector.shape_cast %184 : vector<8xf32> to vector<8x1xf32>
    %cst_75 = arith.constant 3.200000e+01 : f32
    %186 = vector.broadcast %cst_75 : f32 to vector<8x1xf32>
    %187 = arith.divf %185, %186 : vector<8x1xf32>
    %188 = vector.broadcast %180 : vector<8x1xf32> to vector<8x32xf32>
    %189 = arith.subf %174, %188 : vector<8x32xf32>
    %cst_76 = arith.constant 9.99999996E-13 : f32
    %190 = vector.broadcast %cst_76 : f32 to vector<8x1xf32>
    %191 = arith.addf %187, %190 : vector<8x1xf32>
    %192 = math.rsqrt %191 : vector<8x1xf32>
    %193 = vector.broadcast %192 : vector<8x1xf32> to vector<8x32xf32>
    %194 = arith.mulf %189, %193 : vector<8x32xf32>
    %195 = vector.broadcast %175 : vector<1x32xf32> to vector<8x32xf32>
    %196 = arith.mulf %194, %195 : vector<8x32xf32>
    %197 = vector.broadcast %176 : vector<1x32xf32> to vector<8x32xf32>
    %198 = arith.addf %196, %197 : vector<8x32xf32>
    %c0_77 = arith.constant 0 : index
    %c0_78 = arith.constant 0 : index
    %c0_79 = arith.constant 0 : index
    %199 = vector.load %arg18[%c0_77, %c0_78, %c0_79] : memref<1x8x32xf32, #tpu.memory_space<vmem>>, vector<1x8x32xf32>
    %200 = vector.shape_cast %199 : vector<1x8x32xf32> to vector<8x32xf32>
    %201 = vector.shape_cast %198 : vector<8x32xf32> to vector<1x8x32xf32>
    tpu.vector_store %arg18[%c0_77, %c0_78, %c0_79], %201 {strides = array<i32>} : memref<1x8x32xf32, #tpu.memory_space<vmem>>, vector<1x8x32xf32>,
    return
  }
  func.func @transform_0(%arg0: i32, %arg1: i32) -> (i32, i32, i32) {
    %c0_i32 = arith.constant 0 : i32
    %c0_i32_0 = arith.constant 0 : i32
    return %arg0, %arg1, %c0_i32 : i32, i32, i32
  }
  func.func @transform_1(%arg0: i32, %arg1: i32) -> (i32, i32, i32) {
    %c0_i32 = arith.constant 0 : i32
    %c0_i32_0 = arith.constant 0 : i32
    %c0_i32_1 = arith.constant 0 : i32
    return %arg0, %c0_i32, %c0_i32_0 : i32, i32, i32
  }
  func.func @transform_2(%arg0: i32, %arg1: i32) -> (i32, i32) {
    %c0_i32 = arith.constant 0 : i32
    %c0_i32_0 = arith.constant 0 : i32
    %c0_i32_1 = arith.constant 0 : i32
    return %c0_i32, %c0_i32_0 : i32, i32
  }
  func.func @transform_3(%arg0: i32, %arg1: i32) -> (i32, i32) {
    %c0_i32 = arith.constant 0 : i32
    %c0_i32_0 = arith.constant 0 : i32
    %c0_i32_1 = arith.constant 0 : i32
    return %c0_i32, %c0_i32_0 : i32, i32
  }
  func.func @transform_4(%arg0: i32, %arg1: i32) -> (i32, i32) {
    %c0_i32 = arith.constant 0 : i32
    %c0_i32_0 = arith.constant 0 : i32
    %c0_i32_1 = arith.constant 0 : i32
    return %c0_i32, %c0_i32_0 : i32, i32
  }
  func.func @transform_5(%arg0: i32, %arg1: i32) -> (i32, i32) {
    %c0_i32 = arith.constant 0 : i32
    %c0_i32_0 = arith.constant 0 : i32
    %c0_i32_1 = arith.constant 0 : i32
    return %c0_i32, %c0_i32_0 : i32, i32
  }
  func.func @transform_6(%arg0: i32, %arg1: i32) -> (i32, i32) {
    %c0_i32 = arith.constant 0 : i32
    %c0_i32_0 = arith.constant 0 : i32
    %c0_i32_1 = arith.constant 0 : i32
    return %c0_i32, %c0_i32_0 : i32, i32
  }
  func.func @transform_7(%arg0: i32, %arg1: i32) -> (i32, i32) {
    %c0_i32 = arith.constant 0 : i32
    %c0_i32_0 = arith.constant 0 : i32
    %c0_i32_1 = arith.constant 0 : i32
    return %c0_i32, %c0_i32_0 : i32, i32
  }
  func.func @transform_8(%arg0: i32, %arg1: i32) -> (i32, i32) {
    %c0_i32 = arith.constant 0 : i32
    %c0_i32_0 = arith.constant 0 : i32
    %c0_i32_1 = arith.constant 0 : i32
    return %c0_i32, %c0_i32_0 : i32, i32
  }
  func.func @transform_9(%arg0: i32, %arg1: i32) -> (i32, i32) {
    %c0_i32 = arith.constant 0 : i32
    %c0_i32_0 = arith.constant 0 : i32
    %c0_i32_1 = arith.constant 0 : i32
    return %c0_i32, %c0_i32_0 : i32, i32
  }
  func.func @transform_10(%arg0: i32, %arg1: i32) -> (i32, i32) {
    %c0_i32 = arith.constant 0 : i32
    %c0_i32_0 = arith.constant 0 : i32
    %c0_i32_1 = arith.constant 0 : i32
    return %c0_i32, %c0_i32_0 : i32, i32
  }
  func.func @transform_11(%arg0: i32, %arg1: i32) -> (i32, i32) {
    %c0_i32 = arith.constant 0 : i32
    %c0_i32_0 = arith.constant 0 : i32
    %c0_i32_1 = arith.constant 0 : i32
    return %c0_i32, %c0_i32_0 : i32, i32
  }
  func.func @transform_12(%arg0: i32, %arg1: i32) -> (i32, i32) {
    %c0_i32 = arith.constant 0 : i32
    %c0_i32_0 = arith.constant 0 : i32
    %c0_i32_1 = arith.constant 0 : i32
    return %c0_i32, %c0_i32_0 : i32, i32
  }
  func.func @transform_13(%arg0: i32, %arg1: i32) -> (i32, i32) {
    %c0_i32 = arith.constant 0 : i32
    %c0_i32_0 = arith.constant 0 : i32
    %c0_i32_1 = arith.constant 0 : i32
    return %c0_i32, %c0_i32_0 : i32, i32
  }
  func.func @transform_14(%arg0: i32, %arg1: i32) -> (i32, i32) {
    %c0_i32 = arith.constant 0 : i32
    %c0_i32_0 = arith.constant 0 : i32
    %c0_i32_1 = arith.constant 0 : i32
    return %c0_i32, %c0_i32_0 : i32, i32
  }
  func.func @transform_15(%arg0: i32, %arg1: i32) -> (i32, i32) {
    %c0_i32 = arith.constant 0 : i32
    %c0_i32_0 = arith.constant 0 : i32
    %c0_i32_1 = arith.constant 0 : i32
    return %c0_i32, %c0_i32_0 : i32, i32
  }
  func.func @transform_16(%arg0: i32, %arg1: i32) -> (i32, i32, i32) {
    %c0_i32 = arith.constant 0 : i32
    %c0_i32_0 = arith.constant 0 : i32
    return %arg0, %arg1, %c0_i32 : i32, i32, i32
  }
}

module attributes {stable_mosaic.version = 11 : i64} {
  func.func @_classify_ce_kernel(%arg0: i32, %arg1: i32, %arg2: memref<16x32xf32, #tpu.memory_space<vmem>>, %arg3: memref<32x128xbf16, #tpu.memory_space<vmem>>, %arg4: memref<1x128xf32, #tpu.memory_space<vmem>>, %arg5: memref<16x1xi32, #tpu.memory_space<vmem>>, %arg6: memref<1x1xf32, #tpu.memory_space<vmem>>, %arg7: memref<1x1xf32, #tpu.memory_space<vmem>>, %arg8: memref<16x1xf32, #tpu.memory_space<vmem>>, %arg9: memref<16x1xf32, #tpu.memory_space<vmem>>, %arg10: memref<16x1xf32, #tpu.memory_space<vmem>>, %arg11: memref<1x1xf32, #tpu.memory_space<vmem>>, %arg12: memref<1x1xf32, #tpu.memory_space<vmem>>) attributes {dimension_semantics = [#tpu.dimension_semantics<arbitrary>, #tpu.dimension_semantics<arbitrary>], iteration_bounds = array<i64: 1, 1>, scalar_prefetch = 0 : i64, scratch_operands = 5 : i64, tpu.core_type = #tpu.core_type<tc>, window_params = [{transform_indices = @transform_0, window_bounds = array<i64: 16, 32>}, {transform_indices = @transform_1, window_bounds = array<i64: 32, 128>}, {transform_indices = @transform_2, window_bounds = array<i64: 1, 128>}, {transform_indices = @transform_3, window_bounds = array<i64: 16, 1>}, {pipeline_mode = #tpu.pipeline_mode<synchronous>, transform_indices = @transform_4, window_bounds = array<i64: 1, 1>}, {pipeline_mode = #tpu.pipeline_mode<synchronous>, transform_indices = @transform_5, window_bounds = array<i64: 1, 1>}]} {
    %c0_i32 = arith.constant 0 : i32
    %0 = arith.cmpi eq, %arg0, %c0_i32 : i32
    %c0_i32_0 = arith.constant 0 : i32
    %1 = arith.cmpi eq, %arg1, %c0_i32_0 : i32
    %2 = arith.andi %0, %1 : i1
    %3 = arith.extui %2 : i1 to i32
    %c0_i32_1 = arith.constant 0 : i32
    %4 = arith.cmpi ne, %3, %c0_i32_1 : i32
    scf.if %4 {
      %cst_34 = arith.constant 0.000000e+00 : f32
      %54 = vector.broadcast %cst_34 : f32 to vector<1x1xf32>
      %c0_35 = arith.constant 0 : index
      %c0_36 = arith.constant 0 : index
      %55 = vector.load %arg11[%c0_35, %c0_36] : memref<1x1xf32, #tpu.memory_space<vmem>>, vector<1x1xf32>
      tpu.vector_store %arg11[%c0_35, %c0_36], %54 {strides = array<i32>} : memref<1x1xf32, #tpu.memory_space<vmem>>, vector<1x1xf32>,
      %cst_37 = arith.constant 0.000000e+00 : f32
      %56 = vector.broadcast %cst_37 : f32 to vector<1x1xf32>
      %c0_38 = arith.constant 0 : index
      %c0_39 = arith.constant 0 : index
      %57 = vector.load %arg12[%c0_38, %c0_39] : memref<1x1xf32, #tpu.memory_space<vmem>>, vector<1x1xf32>
      tpu.vector_store %arg12[%c0_38, %c0_39], %56 {strides = array<i32>} : memref<1x1xf32, #tpu.memory_space<vmem>>, vector<1x1xf32>,
    } else {
    }
    %c0_i32_2 = arith.constant 0 : i32
    %5 = arith.cmpi eq, %arg1, %c0_i32_2 : i32
    %6 = arith.extui %5 : i1 to i32
    %c0_i32_3 = arith.constant 0 : i32
    %7 = arith.cmpi ne, %6, %c0_i32_3 : i32
    scf.if %7 {
      %cst_34 = arith.constant 0xFF800000 : f32
      %54 = vector.broadcast %cst_34 : f32 to vector<16x1xf32>
      %c0_35 = arith.constant 0 : index
      %c0_36 = arith.constant 0 : index
      %55 = vector.load %arg8[%c0_35, %c0_36] : memref<16x1xf32, #tpu.memory_space<vmem>>, vector<16x1xf32>
      tpu.vector_store %arg8[%c0_35, %c0_36], %54 {strides = array<i32>} : memref<16x1xf32, #tpu.memory_space<vmem>>, vector<16x1xf32>,
      %cst_37 = arith.constant 0.000000e+00 : f32
      %56 = vector.broadcast %cst_37 : f32 to vector<16x1xf32>
      %c0_38 = arith.constant 0 : index
      %c0_39 = arith.constant 0 : index
      %57 = vector.load %arg9[%c0_38, %c0_39] : memref<16x1xf32, #tpu.memory_space<vmem>>, vector<16x1xf32>
      tpu.vector_store %arg9[%c0_38, %c0_39], %56 {strides = array<i32>} : memref<16x1xf32, #tpu.memory_space<vmem>>, vector<16x1xf32>,
      %cst_40 = arith.constant 0.000000e+00 : f32
      %58 = vector.broadcast %cst_40 : f32 to vector<16x1xf32>
      %c0_41 = arith.constant 0 : index
      %c0_42 = arith.constant 0 : index
      %59 = vector.load %arg10[%c0_41, %c0_42] : memref<16x1xf32, #tpu.memory_space<vmem>>, vector<16x1xf32>
      tpu.vector_store %arg10[%c0_41, %c0_42], %58 {strides = array<i32>} : memref<16x1xf32, #tpu.memory_space<vmem>>, vector<16x1xf32>,
    } else {
    }
    %c0 = arith.constant 0 : index
    %c0_4 = arith.constant 0 : index
    %8 = vector.load %arg2[%c0, %c0_4] : memref<16x32xf32, #tpu.memory_space<vmem>>, vector<16x32xf32>
    %9 = arith.truncf %8 : vector<16x32xf32> to vector<16x32xbf16>
    %c0_5 = arith.constant 0 : index
    %c0_6 = arith.constant 0 : index
    %10 = vector.load %arg3[%c0_5, %c0_6] : memref<32x128xbf16, #tpu.memory_space<vmem>>, vector<32x128xbf16>
    %cst = arith.constant dense<0.000000e+00> : vector<16x128xf32>
    %11 = tpu.matmul %9, %10, %cst {dimension_numbers = #tpu.dot_dimension_numbers<[1], [0], [0], [1], [0, 0, 1, 1], [], []>} : vector<16x32xbf16>, vector<32x128xbf16>, vector<16x128xf32> -> vector<16x128xf32>
    %c0_7 = arith.constant 0 : index
    %c0_8 = arith.constant 0 : index
    %12 = vector.load %arg4[%c0_7, %c0_8] : memref<1x128xf32, #tpu.memory_space<vmem>>, vector<1x128xf32>
    %13 = vector.broadcast %12 : vector<1x128xf32> to vector<16x128xf32>
    %14 = arith.addf %11, %13 : vector<16x128xf32>
    %c0_9 = arith.constant 0 : index
    %c0_10 = arith.constant 0 : index
    %15 = vector.load %arg8[%c0_9, %c0_10] : memref<16x1xf32, #tpu.memory_space<vmem>>, vector<16x1xf32>
    %cst_11 = arith.constant dense<0xFF800000> : vector<16xf32>
    %16 = vector.multi_reduction <maximumf>, %14, %cst_11 [1] : vector<16x128xf32> to vector<16xf32>
    %17 = vector.shape_cast %16 : vector<16xf32> to vector<16x1xf32>
    %18 = arith.maximumf %15, %17 : vector<16x1xf32>
    %c0_12 = arith.constant 0 : index
    %c0_13 = arith.constant 0 : index
    %19 = vector.load %arg9[%c0_12, %c0_13] : memref<16x1xf32, #tpu.memory_space<vmem>>, vector<16x1xf32>
    %c0_14 = arith.constant 0 : index
    %c0_15 = arith.constant 0 : index
    %20 = vector.load %arg8[%c0_14, %c0_15] : memref<16x1xf32, #tpu.memory_space<vmem>>, vector<16x1xf32>
    %21 = arith.subf %20, %18 : vector<16x1xf32>
    %22 = math.exp %21 : vector<16x1xf32>
    %23 = arith.mulf %19, %22 : vector<16x1xf32>
    %24 = vector.broadcast %18 : vector<16x1xf32> to vector<16x128xf32>
    %25 = arith.subf %14, %24 : vector<16x128xf32>
    %26 = math.exp %25 : vector<16x128xf32>
    %cst_16 = arith.constant dense<0.000000e+00> : vector<16xf32>
    %27 = vector.multi_reduction <add>, %26, %cst_16 [1] : vector<16x128xf32> to vector<16xf32>
    %28 = vector.shape_cast %27 : vector<16xf32> to vector<16x1xf32>
    %29 = arith.addf %23, %28 : vector<16x1xf32>
    %c0_17 = arith.constant 0 : index
    %c0_18 = arith.constant 0 : index
    %30 = vector.load %arg9[%c0_17, %c0_18] : memref<16x1xf32, #tpu.memory_space<vmem>>, vector<16x1xf32>
    tpu.vector_store %arg9[%c0_17, %c0_18], %29 {strides = array<i32>} : memref<16x1xf32, #tpu.memory_space<vmem>>, vector<16x1xf32>,
    %c0_19 = arith.constant 0 : index
    %c0_20 = arith.constant 0 : index
    %31 = vector.load %arg8[%c0_19, %c0_20] : memref<16x1xf32, #tpu.memory_space<vmem>>, vector<16x1xf32>
    tpu.vector_store %arg8[%c0_19, %c0_20], %18 {strides = array<i32>} : memref<16x1xf32, #tpu.memory_space<vmem>>, vector<16x1xf32>,
    %32 = tpu.iota {dimensions = array<i32: 1>} : vector<16x128xi32>
    %c128_i32 = arith.constant 128 : i32
    %33 = arith.muli %arg1, %c128_i32 : i32
    %34 = vector.broadcast %33 : i32 to vector<16x128xi32>
    %35 = arith.addi %32, %34 : vector<16x128xi32>
    %c0_21 = arith.constant 0 : index
    %c0_22 = arith.constant 0 : index
    %36 = vector.load %arg10[%c0_21, %c0_22] : memref<16x1xf32, #tpu.memory_space<vmem>>, vector<16x1xf32>
    %c0_23 = arith.constant 0 : index
    %c0_24 = arith.constant 0 : index
    %37 = vector.load %arg5[%c0_23, %c0_24] : memref<16x1xi32, #tpu.memory_space<vmem>>, vector<16x1xi32>
    %38 = vector.broadcast %37 : vector<16x1xi32> to vector<16x128xi32>
    %39 = arith.cmpi eq, %35, %38 : vector<16x128xi32>
    %cst_25 = arith.constant 0.000000e+00 : f32
    %40 = vector.broadcast %cst_25 : f32 to vector<16x128xf32>
    %41 = arith.select %39, %14, %40 : vector<16x128xi1>, vector<16x128xf32>
    %cst_26 = arith.constant dense<0.000000e+00> : vector<16xf32>
    %42 = vector.multi_reduction <add>, %41, %cst_26 [1] : vector<16x128xf32> to vector<16xf32>
    %43 = vector.shape_cast %42 : vector<16xf32> to vector<16x1xf32>
    %44 = arith.addf %36, %43 : vector<16x1xf32>
    %c0_27 = arith.constant 0 : index
    %c0_28 = arith.constant 0 : index
    %45 = vector.load %arg10[%c0_27, %c0_28] : memref<16x1xf32, #tpu.memory_space<vmem>>, vector<16x1xf32>
    tpu.vector_store %arg10[%c0_27, %c0_28], %44 {strides = array<i32>} : memref<16x1xf32, #tpu.memory_space<vmem>>, vector<16x1xf32>,
    %c0_i32_29 = arith.constant 0 : i32
    %46 = arith.cmpi eq, %arg1, %c0_i32_29 : i32
    %47 = arith.extui %46 : i1 to i32
    %c0_i32_30 = arith.constant 0 : i32
    %48 = arith.cmpi ne, %47, %c0_i32_30 : i32
    scf.if %48 {
      %c0_34 = arith.constant 0 : index
      %c0_35 = arith.constant 0 : index
      %54 = vector.load %arg8[%c0_34, %c0_35] : memref<16x1xf32, #tpu.memory_space<vmem>>, vector<16x1xf32>
      %c0_36 = arith.constant 0 : index
      %c0_37 = arith.constant 0 : index
      %55 = vector.load %arg9[%c0_36, %c0_37] : memref<16x1xf32, #tpu.memory_space<vmem>>, vector<16x1xf32>
      %56 = math.log %55 : vector<16x1xf32>
      %57 = arith.addf %54, %56 : vector<16x1xf32>
      %c0_38 = arith.constant 0 : index
      %c0_39 = arith.constant 0 : index
      %58 = vector.load %arg5[%c0_38, %c0_39] : memref<16x1xi32, #tpu.memory_space<vmem>>, vector<16x1xi32>
      %c-1_i32 = arith.constant -1 : i32
      %59 = vector.broadcast %c-1_i32 : i32 to vector<16x1xi32>
      %60 = arith.cmpi ne, %58, %59 : vector<16x1xi32>
      %61 = arith.extui %60 : vector<16x1xi1> to vector<16x1xi32>
      %62 = arith.sitofp %61 : vector<16x1xi32> to vector<16x1xf32>
      %c0_40 = arith.constant 0 : index
      %c0_41 = arith.constant 0 : index
      %63 = vector.load %arg11[%c0_40, %c0_41] : memref<1x1xf32, #tpu.memory_space<vmem>>, vector<1x1xf32>
      %c0_42 = arith.constant 0 : index
      %c0_43 = arith.constant 0 : index
      %64 = vector.load %arg10[%c0_42, %c0_43] : memref<16x1xf32, #tpu.memory_space<vmem>>, vector<16x1xf32>
      %65 = arith.subf %57, %64 : vector<16x1xf32>
      %66 = arith.mulf %65, %62 : vector<16x1xf32>
      %cst_44 = arith.constant dense<0.000000e+00> : vector<1xf32>
      %67 = vector.multi_reduction <add>, %66, %cst_44 [0] : vector<16x1xf32> to vector<1xf32>
      %68 = vector.shape_cast %67 : vector<1xf32> to vector<1x1xf32>
      %69 = arith.addf %63, %68 : vector<1x1xf32>
      %c0_45 = arith.constant 0 : index
      %c0_46 = arith.constant 0 : index
      %70 = vector.load %arg11[%c0_45, %c0_46] : memref<1x1xf32, #tpu.memory_space<vmem>>, vector<1x1xf32>
      tpu.vector_store %arg11[%c0_45, %c0_46], %69 {strides = array<i32>} : memref<1x1xf32, #tpu.memory_space<vmem>>, vector<1x1xf32>,
      %c0_47 = arith.constant 0 : index
      %c0_48 = arith.constant 0 : index
      %71 = vector.load %arg12[%c0_47, %c0_48] : memref<1x1xf32, #tpu.memory_space<vmem>>, vector<1x1xf32>
      %cst_49 = arith.constant dense<0.000000e+00> : vector<1xf32>
      %72 = vector.multi_reduction <add>, %62, %cst_49 [0] : vector<16x1xf32> to vector<1xf32>
      %73 = vector.shape_cast %72 : vector<1xf32> to vector<1x1xf32>
      %74 = arith.addf %71, %73 : vector<1x1xf32>
      %c0_50 = arith.constant 0 : index
      %c0_51 = arith.constant 0 : index
      %75 = vector.load %arg12[%c0_50, %c0_51] : memref<1x1xf32, #tpu.memory_space<vmem>>, vector<1x1xf32>
      tpu.vector_store %arg12[%c0_50, %c0_51], %74 {strides = array<i32>} : memref<1x1xf32, #tpu.memory_space<vmem>>, vector<1x1xf32>,
    } else {
    }
    %c0_i32_31 = arith.constant 0 : i32
    %49 = arith.cmpi eq, %arg0, %c0_i32_31 : i32
    %c0_i32_32 = arith.constant 0 : i32
    %50 = arith.cmpi eq, %arg1, %c0_i32_32 : i32
    %51 = arith.andi %49, %50 : i1
    %52 = arith.extui %51 : i1 to i32
    %c0_i32_33 = arith.constant 0 : i32
    %53 = arith.cmpi ne, %52, %c0_i32_33 : i32
    scf.if %53 {
      %c0_34 = arith.constant 0 : index
      %c0_35 = arith.constant 0 : index
      %54 = vector.load %arg11[%c0_34, %c0_35] : memref<1x1xf32, #tpu.memory_space<vmem>>, vector<1x1xf32>
      %c0_36 = arith.constant 0 : index
      %c0_37 = arith.constant 0 : index
      %55 = vector.load %arg6[%c0_36, %c0_37] : memref<1x1xf32, #tpu.memory_space<vmem>>, vector<1x1xf32>
      tpu.vector_store %arg6[%c0_36, %c0_37], %54 {strides = array<i32>} : memref<1x1xf32, #tpu.memory_space<vmem>>, vector<1x1xf32>,
      %c0_38 = arith.constant 0 : index
      %c0_39 = arith.constant 0 : index
      %56 = vector.load %arg12[%c0_38, %c0_39] : memref<1x1xf32, #tpu.memory_space<vmem>>, vector<1x1xf32>
      %c0_40 = arith.constant 0 : index
      %c0_41 = arith.constant 0 : index
      %57 = vector.load %arg7[%c0_40, %c0_41] : memref<1x1xf32, #tpu.memory_space<vmem>>, vector<1x1xf32>
      tpu.vector_store %arg7[%c0_40, %c0_41], %56 {strides = array<i32>} : memref<1x1xf32, #tpu.memory_space<vmem>>, vector<1x1xf32>,
    } else {
    }
    return
  }
  func.func @transform_0(%arg0: i32, %arg1: i32) -> (i32, i32) {
    %c0_i32 = arith.constant 0 : i32
    %c0_i32_0 = arith.constant 0 : i32
    return %arg0, %c0_i32 : i32, i32
  }
  func.func @transform_1(%arg0: i32, %arg1: i32) -> (i32, i32) {
    %c0_i32 = arith.constant 0 : i32
    %c0_i32_0 = arith.constant 0 : i32
    return %c0_i32, %arg1 : i32, i32
  }
  func.func @transform_2(%arg0: i32, %arg1: i32) -> (i32, i32) {
    %c0_i32 = arith.constant 0 : i32
    %c0_i32_0 = arith.constant 0 : i32
    return %c0_i32, %arg1 : i32, i32
  }
  func.func @transform_3(%arg0: i32, %arg1: i32) -> (i32, i32) {
    %c0_i32 = arith.constant 0 : i32
    %c0_i32_0 = arith.constant 0 : i32
    return %arg0, %c0_i32 : i32, i32
  }
  func.func @transform_4(%arg0: i32, %arg1: i32) -> (i32, i32) {
    %c0_i32 = arith.constant 0 : i32
    %c0_i32_0 = arith.constant 0 : i32
    %c0_i32_1 = arith.constant 0 : i32
    return %c0_i32, %c0_i32_0 : i32, i32
  }
  func.func @transform_5(%arg0: i32, %arg1: i32) -> (i32, i32) {
    %c0_i32 = arith.constant 0 : i32
    %c0_i32_0 = arith.constant 0 : i32
    %c0_i32_1 = arith.constant 0 : i32
    return %c0_i32, %c0_i32_0 : i32, i32
  }
}

</mosaic_0001>

<llo_original>
// kernel: _lambda_.3
$region0: #{_lambda_.3}
  #allocation0 [shape = 'u32[]', space=smem, size = 0x4, offset = 0x4, fixed_abs, tag = 'smem constant byte address 0x4 - core index']
  #allocation1 [shape = 'u32[72,128]{1,0:T(1,128)}', space=vmem, size = 0x9000, scoped, tag = 'internal scratch']
  %s0 = inlined_call_operand.vmem [shape: f32[2,8,32], index: 0, kind: input, shape index: {}]
  %s1 = inlined_call_operand.vmem [shape: f32[1,32], index: 1, kind: input, shape index: {}]
  %s2 = inlined_call_operand.vmem [shape: f32[1,32], index: 2, kind: input, shape index: {}]
  %s3 = inlined_call_operand.vmem [shape: f32[2,8,32], index: 3, kind: output, shape index: {}]
  %s4 = sld [smem:[#allocation0]]
  $region45: #{_lambda_.3} parent=0
    _
  %s6 = ssub.s32 1, %s4
  %s7 = scalar_select 0, %s6, %s4
  loop: start=0, step=1, limit=4
  $region2: #{_lambda_.3} parent=0 // loop_pre_header
    _
  $region3: #{_lambda_.3} parent=0 // loop_header
    %s9 = sphi 0, %s13
    %p10 = scmp.ge.s32.totalorder %s9, 4
    %s19 = sphi 0, %s21
    %s22 = sphi 0, %s19
    %s23 = sphi 0, %s22
    %s39 = sphi 0, %s23
    %s43 = sphi 0, %s43
    %s45 = sphi 0, %s43
    %s46 = sphi 0, %s45
    %s60 = sphi 0, %s46
    %s64 = sphi 0, %s64
    %s66 = sphi 0, %s64
    %s67 = sphi 0, %s66
    %s81 = sphi 0, %s67
    %s87 = sphi 0, %s89
    %s90 = sphi 0, %s87
    %s91 = sphi 0, %s90
    %s107 = sphi 0, %s91
  $region4: #{_lambda_.3} parent=0 // loop_header_branch
    %12 = sbr.rel (%p10) target = $region8
  $region5: #{_lambda_.3} parent=0 // loop_body
    %s14 = ssub.s32 %s9, 1
    %s15 = ssub.s32 %s9, 2
    %s16 = sadd.s32 %s9, 1
    %s17 = ssub.s32 %s9, %s16
    %p18 = scmp.eq.s32.totalorder %s17, 0
    %s20 = sadd.s32 %s19, 1
    %s21 = scalar_select %p18, %s19, %s20
    %p24 = pneg %p18
    %p25 = scmp.eq.s32.totalorder %s9, 1
    %p26 = por %p24, %p25
    %p27 = scmp.ne.s32.totalorder %s19, %s22
    %p28 = scmp.eq.s32.totalorder %s9, 0
    %p29 = por %p27, %p28
    %p30 = scmp.ne.s32.totalorder %s19, %s22
    %p31 = scmp.eq.s32.totalorder %s14, 1
    %p32 = por %p30, %p31
    %p33 = scmp.ne.s32.totalorder %s22, %s23
    %p34 = scmp.eq.s32.totalorder %s14, 0
    %p35 = por %p33, %p34
    %p36 = scmp.ne.s32.totalorder %s22, %s23
    %p37 = scmp.eq.s32.totalorder %s15, 1
    %p38 = por %p36, %p37
    %p40 = scmp.ne.s32.totalorder %s23, %s39
    %p41 = scmp.eq.s32.totalorder %s15, 0
    %p42 = por %p40, %p41
    %s44 = sadd.s32 %s43, 1
    %p47 = scmp.eq.s32.totalorder %s9, 1
    %p48 = scmp.ne.s32.totalorder %s43, %s45
    %p49 = scmp.eq.s32.totalorder %s9, 0
    %p50 = por %p48, %p49
    %p51 = scmp.ne.s32.totalorder %s43, %s45
    %p52 = scmp.eq.s32.totalorder %s14, 1
    %p53 = por %p51, %p52
    %p54 = scmp.ne.s32.totalorder %s45, %s46
    %p55 = scmp.eq.s32.totalorder %s14, 0
    %p56 = por %p54, %p55
    %p57 = scmp.ne.s32.totalorder %s45, %s46
    %p58 = scmp.eq.s32.totalorder %s15, 1
    %p59 = por %p57, %p58
    %p61 = scmp.ne.s32.totalorder %s46, %s60
    %p62 = scmp.eq.s32.totalorder %s15, 0
    %p63 = por %p61, %p62
    %s65 = sadd.s32 %s64, 1
    %p68 = scmp.eq.s32.totalorder %s9, 1
    %p69 = scmp.ne.s32.totalorder %s64, %s66
    %p70 = scmp.eq.s32.totalorder %s9, 0
    %p71 = por %p69, %p70
    %p72 = scmp.ne.s32.totalorder %s64, %s66
    %p73 = scmp.eq.s32.totalorder %s14, 1
    %p74 = por %p72, %p73
    %p75 = scmp.ne.s32.totalorder %s66, %s67
    %p76 = scmp.eq.s32.totalorder %s14, 0
    %p77 = por %p75, %p76
    %p78 = scmp.ne.s32.totalorder %s66, %s67
    %p79 = scmp.eq.s32.totalorder %s15, 1
    %p80 = por %p78, %p79
    %p82 = scmp.ne.s32.totalorder %s67, %s81
    %p83 = scmp.eq.s32.totalorder %s15, 0
    %p84 = por %p82, %p83
    %s85 = ssub.s32 %s9, %s16
    %p86 = scmp.eq.s32.totalorder %s85, 0
    %s88 = sadd.s32 %s87, 1
    %s89 = scalar_select %p86, %s87, %s88
    %p92 = pneg %p86
    %p93 = scmp.eq.s32.totalorder %s9, 1
    %p94 = por %p92, %p93
    %p95 = scmp.ne.s32.totalorder %s87, %s90
    %p96 = scmp.eq.s32.totalorder %s9, 0
    %p97 = por %p95, %p96
    %p98 = scmp.ne.s32.totalorder %s87, %s90
    %p99 = scmp.eq.s32.totalorder %s14, 1
    %p100 = por %p98, %p99
    %p101 = scmp.ne.s32.totalorder %s90, %s91
    %p102 = scmp.eq.s32.totalorder %s14, 0
    %p103 = por %p101, %p102
    %p104 = scmp.ne.s32.totalorder %s90, %s91
    %p105 = scmp.eq.s32.totalorder %s15, 1
    %p106 = por %p104, %p105
    %p108 = scmp.ne.s32.totalorder %s91, %s107
    %p109 = scmp.eq.s32.totalorder %s15, 0
    %p110 = por %p108, %p109
    %p111 = scmp.le.s32.totalorder 1, %s9
    %p112 = scmp.lt.s32.totalorder %s9, 3
    %p113 = pnand %p111, %p112
    %p114 = pneg %p113
    // Predicated region
    $region9: #{_lambda_.3} parent=5 // pred_check
      _
    $region10: #{_lambda_.3} parent=5 // pred_check_branch
      %116 = sbr.rel (%p113) target = $region12
    $region11: #{_lambda_.3} parent=5 // pred_region
      %s117 = ssub.s32 %s9, 1
      // Predicated region
      $region13: #{_lambda_.3} parent=11 // pred_check
        %p118 = pneg %p56
      $region14: #{_lambda_.3} parent=11 // pred_check_branch
        %120 = sbr.rel (%p118) target = $region16
      $region15: #{_lambda_.3} parent=11 // pred_region
        _
      $region16: #{_lambda_.3} parent=11 // pred_fallthru
        _
      // Predicated region
      $region17: #{_lambda_.3} parent=11 // pred_check
        %p121 = pneg %p77
      $region18: #{_lambda_.3} parent=11 // pred_check_branch
        %123 = sbr.rel (%p121) target = $region20
      $region19: #{_lambda_.3} parent=11 // pred_region
        _
      $region20: #{_lambda_.3} parent=11 // pred_fallthru
        _
    $region12: #{_lambda_.3} parent=5 // pred_fallthru
      _
    %p124 = scmp.lt.s32.totalorder %s9, 2
    // Predicated region
    $region21: #{_lambda_.3} parent=5 // pred_check
      %p125 = pneg %p124
    $region22: #{_lambda_.3} parent=5 // pred_check_branch
      %127 = sbr.rel (%p125) target = $region24
    $region23: #{_lambda_.3} parent=5 // pred_region
      // Predicated region
      $region25: #{_lambda_.3} parent=23 // pred_check
        %p128 = pneg %p29
      $region26: #{_lambda_.3} parent=23 // pred_check_branch
        %130 = sbr.rel (%p128) target = $region28
      $region27: #{_lambda_.3} parent=23 // pred_region
        %p131 = scmp.lt.s32.totalorder %s9, 1
        %s132 = scalar_select %p131, %s9, 1
        %s133 = smul.addr %s132, 8
        %s134 = scalar_lea.vmem %s0, %s133
      $region28: #{_lambda_.3} parent=23 // pred_fallthru
        _
    $region24: #{_lambda_.3} parent=5 // pred_fallthru
      _
    %p135 = scmp.le.s32.totalorder 1, %s9
    %p136 = scmp.lt.s32.totalorder %s9, 3
    %p137 = pnand %p135, %p136
    %p138 = pneg %p137
    // Predicated region
    $region29: #{_lambda_.3} parent=5 // pred_check
      _
    $region30: #{_lambda_.3} parent=5 // pred_check_branch
      %140 = sbr.rel (%p137) target = $region32
    $region31: #{_lambda_.3} parent=5 // pred_region
      %s141 = ssub.s32 %s9, 1
      %p142 = scmp.lt.s32.totalorder %s14, 1
      %s143 = scalar_select %p142, %s14, 1
      %s144 = smul.addr %s143, 8
      %s145 = scalar_lea.vmem %s0, %s144
      %p146 = pneg %p35
      %p147 = pneg %p32
      %p148 = pneg %p56
      %p149 = pneg %p53
      %p150 = pneg %p77
      %p151 = pneg %p74
      %p152 = pneg %p103
      %p153 = pneg %p100
      %p154 = scmp.lt.s32.totalorder %s14, 1
      %s155 = scalar_select %p154, %s14, 1
      %s156 = smul.addr %s155, 8
      %s157 = scalar_lea.vmem %s3, %s156
      %p158 = scmp.lt.s32.totalorder %s14, 1
      %s159 = scalar_select %p158, %s14, 1
      %s160 = smul.addr %s159, 8
      %s161 = scalar_lea.vmem %s0, %s160
      %p162 = scmp.lt.s32.totalorder %s14, 1
      %s163 = scalar_select %p162, %s14, 1
      %s164 = smul.addr %s163, 8
      %s165 = scalar_lea.vmem %s3, %s164
      %v166 = vld [vmem:[%s161] sm:$0xff]
      %v167 = vld [vmem:[%s1] sm:$0x1]
      %v168 = vld [vmem:[%s2] sm:$0x1]
      %vm169 = vcmask 261120
      %v170 = vsel %vm169, %v166, 0.0
      %171 = vadd.xlane.f32.xlu0 %v170
      %v172 = vpop.xlane.xlu0 %171
      %v173 = vrcp.pop 32.0
      %v174 = vmul.f32 32.0, %v173
      %v175 = vsub.f32 1.0, %v174
      %v176 = vmul.f32 %v173, %v175
      %v177 = vadd.f32 %v173, %v176
      %vm178 = vweird.f32 %v173
      %v179 = vsel %vm178, %v173, %v177
      %v180 = vmul.f32 %v172, %v179
      %v181 = vsub.f32 %v166, %v180
      %v182 = vmul.f32 %v181, %v181
      %v183 = vsel %vm169, %v182, 0.0
      %184 = vadd.xlane.f32.xlu0 %v183
      %v185 = vpop.xlane.xlu0 %184
      %v186 = vmul.f32 %v185, %v179
      %v187 = vadd.f32 %v186, 1e-12
      %v188 = vrsqrt.pop %v187
      %v189 = vmul.f32 %v188, %v187
      %v190 = vmul.f32 %v189, %v188
      %v191 = vmul.f32 0.5, %v190
      %v192 = vsub.f32 1.5, %v191
      %v193 = vmul.f32 %v188, %v192
      %vm194 = vweird.f32 %v187
      %vm195 = vweird.f32 %v188
      %vm196 = vmor %vm194, %vm195
      %v197 = vsel %vm196, %v188, %v193
      %v198 = vmul.f32 %v181, %v197
      %v200 = vperm.slane %v167, 0
      %v202 = vmul.f32 %v198, %v200
      %v204 = vperm.slane %v168, 0
      %v206 = vadd.f32 %v202, %v204
      %207 = vst.msk [vmem:[%s165] sm:$0xff] %vm169, %v206
      %p208 = scmp.lt.s32.totalorder %s14, 1
      %s209 = scalar_select %p208, %s14, 1
      %s210 = smul.addr %s209, 8
      %s211 = scalar_lea.vmem %s3, %s210
      // Predicated region
      $region33: #{_lambda_.3} parent=31 // pred_check
        %p212 = pneg %p100
      $region34: #{_lambda_.3} parent=31 // pred_check_branch
        %214 = sbr.rel (%p212) target = $region36
      $region35: #{_lambda_.3} parent=31 // pred_region
        _
      $region36: #{_lambda_.3} parent=31 // pred_fallthru
        _
    $region32: #{_lambda_.3} parent=5 // pred_fallthru
      _
    %p215 = scmp.le.s32.totalorder 2, %s9
    // Predicated region
    $region37: #{_lambda_.3} parent=5 // pred_check
      %p216 = pneg %p215
    $region38: #{_lambda_.3} parent=5 // pred_check_branch
      %218 = sbr.rel (%p216) target = $region40
    $region39: #{_lambda_.3} parent=5 // pred_region
      %s219 = ssub.s32 %s9, 2
      // Predicated region
      $region41: #{_lambda_.3} parent=39 // pred_check
        %p220 = pneg %p106
      $region42: #{_lambda_.3} parent=39 // pred_check_branch
        %222 = sbr.rel (%p220) target = $region44
      $region43: #{_lambda_.3} parent=39 // pred_region
        %p223 = scmp.lt.s32.totalorder %s15, 1
        %s224 = scalar_select %p223, %s15, 1
        %s225 = smul.addr %s224, 8
        %s226 = scalar_lea.vmem %s3, %s225
      $region44: #{_lambda_.3} parent=39 // pred_fallthru
        _
    $region40: #{_lambda_.3} parent=5 // pred_fallthru
      _
  $region6: #{_lambda_.3} parent=0 // loop_footer
    %s13 = sadd.s32 1, %s9
  $region7: #{_lambda_.3} parent=0 // loop_footer_branch
    %8 = sbr.rel target = $region3
  $region8: #{_lambda_.3} parent=0 // loop_exit
    _

// kernel: _lambda_.5
$region0: #{_lambda_.5}
  #allocation0 [shape = 'u32[]', space=smem, size = 0x4, offset = 0x4, fixed_abs, tag = 'smem constant byte address 0x4 - core index']
  #allocation1 [shape = 'u32[72,128]{1,0:T(1,128)}', space=vmem, size = 0x9000, scoped, tag = 'internal scratch']
  #allocation2 [shape = 'f32[16,1]{1,0:T(8,128)}', space=vmem, size = 0x2000, scoped, tag = 'scratch operand']
  #allocation3 [shape = 'f32[16,1]{1,0:T(8,128)}', space=vmem, size = 0x2000, scoped, tag = 'scratch operand']
  #allocation4 [shape = 'f32[16,1]{1,0:T(8,128)}', space=vmem, size = 0x2000, scoped, tag = 'scratch operand']
  #allocation5 [shape = 'f32[1,1]{1,0:T(1,128)}', space=vmem, size = 0x200, scoped, tag = 'scratch operand']
  #allocation6 [shape = 'f32[1,1]{1,0:T(1,128)}', space=vmem, size = 0x200, scoped, tag = 'scratch operand']
  %s0 = inlined_call_operand.vmem [shape: f32[16,32], index: 0, kind: input, shape index: {}]
  %s1 = inlined_call_operand.vmem [shape: bf16[32,128], index: 1, kind: input, shape index: {}]
  %s2 = inlined_call_operand.vmem [shape: f32[1,128], index: 2, kind: input, shape index: {}]
  %s3 = inlined_call_operand.vmem [shape: s32[16,1], index: 3, kind: input, shape index: {}]
  %s4 = inlined_call_operand.hbm [shape: f32[1,1], index: 4, kind: output, shape index: {0}]
  %s5 = inlined_call_operand.hbm [shape: f32[1,1], index: 5, kind: output, shape index: {1}]
  %6 = xla_tuple %s4, %s5
  %s7 = sld [smem:[#allocation0]]
  $region50: #{_lambda_.5} parent=0
    _
  %s9 = ssub.s32 1, %s7
  %s10 = scalar_select 0, %s9, %s7
  $region1: #{_lambda_.5} parent=0
    #allocation7 [shape = 'u8[512]{0}', space=vmem, size = 0x400, scoped, tag = 'output window, operand 0, single buffered']
    #allocation8 [shape = 's32[1]{0}', space=sflag, size = 0x4, scoped, tag = 'scoped memory for _lambda_.5']
    #allocation9 [shape = 'u8[512]{0}', space=vmem, size = 0x400, scoped, tag = 'output window, operand 1, single buffered']
    #allocation10 [shape = 's32[1]{0}', space=sflag, size = 0x4, scoped, tag = 'scoped memory for _lambda_.5']
    %11 = vsyncpa [#allocation8], 0
    %12 = vsyncpa [#allocation10], 0
    // Predicated region
    $region2: #{_lambda_.5} parent=1 // pred_check
      _
    $region3: #{_lambda_.5} parent=1 // pred_check_branch
      %14 = sbr.rel (0) target = $region5
    $region4: #{_lambda_.5} parent=1 // pred_region
      _
    $region5: #{_lambda_.5} parent=1 // pred_fallthru
      _
    // Predicated region
    $region6: #{_lambda_.5} parent=1 // pred_check
      _
    $region7: #{_lambda_.5} parent=1 // pred_check_branch
      %16 = sbr.rel (0) target = $region9
    $region8: #{_lambda_.5} parent=1 // pred_region
      _
    $region9: #{_lambda_.5} parent=1 // pred_fallthru
      _
    // Predicated region
    $region10: #{_lambda_.5} parent=1 // pred_check
      _
    $region11: #{_lambda_.5} parent=1 // pred_check_branch
      %18 = sbr.rel (0) target = $region13
    $region12: #{_lambda_.5} parent=1 // pred_region
      _
    $region13: #{_lambda_.5} parent=1 // pred_fallthru
      _
    // Predicated region
    $region14: #{_lambda_.5} parent=1 // pred_check
      _
    $region15: #{_lambda_.5} parent=1 // pred_check_branch
      %20 = sbr.rel (0) target = $region17
    $region16: #{_lambda_.5} parent=1 // pred_region
      _
    $region17: #{_lambda_.5} parent=1 // pred_fallthru
      _
    %p22 = scmp.eq.s32.totalorder 0, 0
    %p23 = scmp.eq.s32.totalorder 0, 0
    %p24 = pnand %p22, %p23
    %p25 = pneg %p24
    // Predicated region
    $region18: #{_lambda_.5} parent=1 // pred_check
      _
    $region19: #{_lambda_.5} parent=1 // pred_check_branch
      %27 = sbr.rel (%p24) target = $region21
    $region20: #{_lambda_.5} parent=1 // pred_region
      %vm28 = vcmask 0
      %29 = vst.msk [vmem:[#allocation5] sm:$0x1] %vm28, 0.0
      %30 = vst.msk [vmem:[#allocation6] sm:$0x1] %vm28, 0.0
    $region21: #{_lambda_.5} parent=1 // pred_fallthru
      _
    // Predicated region
    $region22: #{_lambda_.5} parent=1 // pred_check
      %p31 = pneg %p23
    $region23: #{_lambda_.5} parent=1 // pred_check_branch
      %33 = sbr.rel (%p31) target = $region25
    $region24: #{_lambda_.5} parent=1 // pred_region
      %vm34 = vcmask 7168
      %35 = vst.msk [vmem:[#allocation2] sm:$0xff] %vm34, -inf
      %36 = vst.msk [vmem:[#allocation2 + $0x8] sm:$0xff] %vm34, -inf
      %37 = vst.msk [vmem:[#allocation3] sm:$0xff] %vm34, 0.0
      %38 = vst.msk [vmem:[#allocation3 + $0x8] sm:$0xff] %vm34, 0.0
      %39 = vst.msk [vmem:[#allocation4] sm:$0xff] %vm34, 0.0
      %40 = vst.msk [vmem:[#allocation4 + $0x8] sm:$0xff] %vm34, 0.0
    $region25: #{_lambda_.5} parent=1 // pred_fallthru
      _
    %v41 = vld [vmem:[%s0] sm:$0xff]
    %v42 = vld [vmem:[%s0 + $0x8] sm:$0xff]
    %v43 = vpack.c.bf16 %v42, %v41
    %v44 = vld [vmem:[%s1] sm:$0xf]
    %v45 = vld [vmem:[%s1 + $0x4] sm:$0xf]
    %v46 = vld [vmem:[%s1 + $0x8] sm:$0xf]
    %v47 = vld [vmem:[%s1 + $0xc] sm:$0xf]
    %v48 = vld [vmem:[%s2] sm:$0x1]
    %v50 = vperm.slane %v48, 0
    %v56 = vunpack.c.l.b16 %v44
    %v57 = vunpack.c.l.b16 %v45
    %v58 = vunpack.c.l.b16 %v46
    %v59 = vunpack.c.l.b16 %v47
    %v60 = vpack.c.b16 %v57, %v56
    %v61 = vpack.c.b16 %v59, %v58
    %vm64 = vcmask 261120
    %v66 = vsel %vm64, %v43, 0
    %68 = vmatpush.bf16.msra.mxu0 0
    %69 = vmatpush.bf16.msra.mxu0 0
    %70 = vmatpush.bf16.msra.mxu0 0
    %71 = vmatpush.bf16.msra.mxu0 0
    %72 = vmatpush.bf16.msra.mxu0 0
    %73 = vmatpush.bf16.msra.mxu0 0
    %74 = vmatpush.bf16.msra.mxu0 %v61
    %75 = vmatpush.bf16.msra.mxu0 %v60
    %76 = vmatmul.bf16.gmra.mxu0 %v66
    %v77 = vpop.f32.mrf.mxu0
    %v78 = vadd.f32 %v50, %v77
    %v79 = vpop.f32.mrf.mxu0
    %v80 = vadd.f32 %v50, %v79
    %81 = vdwg.mxu0
    %v82 = vld [vmem:[#allocation2] sm:$0xff]
    %v83 = vld [vmem:[#allocation2 + $0x8] sm:$0xff]
    %84 = vmax.xlane.f32.xlu0 %v78
    %v85 = vpop.xlane.xlu0 %84
    %86 = vmax.xlane.f32.xlu0 %v80
    %v87 = vpop.xlane.xlu0 %86
    %v88 = vmax.f32 %v82, %v85
    %v89 = vmax.f32 %v83, %v87
    %v90 = vld [vmem:[#allocation3] sm:$0xff]
    %v91 = vld [vmem:[#allocation3 + $0x8] sm:$0xff]
    %v92 = vsub.f32 %v82, %v88
    %v93 = vsub.f32 %v83, %v89
    %v94 = vmul.f32 %v92, 1.442695
    %v95 = vpow.pop %v94
    %v96 = vmul.f32 %v93, 1.442695
    %v97 = vpow.pop %v96
    %v98 = vmul.f32 %v90, %v95
    %v99 = vmul.f32 %v91, %v97
    %101 = vset.pattern.permute.xlu0 0
    %102 = vperm.xlu0 %101, %v88
    %v103 = vpop.permute.xlu0 %102
    %106 = vset.pattern.permute.xlu0 0
    %107 = vperm.xlu0 %106, %v89
    %v108 = vpop.permute.xlu0 %107
    %v110 = vsub.f32 %v78, %v103
    %v111 = vsub.f32 %v80, %v108
    %v112 = vmul.f32 %v110, 1.442695
    %v113 = vpow.pop %v112
    %v114 = vmul.f32 %v111, 1.442695
    %v115 = vpow.pop %v114
    %116 = vadd.xlane.f32.xlu0 %v113
    %v117 = vpop.xlane.xlu0 %116
    %118 = vadd.xlane.f32.xlu0 %v115
    %v119 = vpop.xlane.xlu0 %118
    %v120 = vadd.f32 %v98, %v117
    %v121 = vadd.f32 %v99, %v119
    %vm122 = vcmask 7168
    %123 = vst.msk [vmem:[#allocation3] sm:$0xff] %vm122, %v120
    %124 = vst.msk [vmem:[#allocation3 + $0x8] sm:$0xff] %vm122, %v121
    %125 = vst.msk [vmem:[#allocation2] sm:$0xff] %vm122, %v88
    %126 = vst.msk [vmem:[#allocation2 + $0x8] sm:$0xff] %vm122, %v89
    %v127 = vlaneseq
    %v128 = vand.u32 %v127, 127
    %s129 = smul.u32 0, 128
    %v130 = vstv %s129
    %v131 = vadd.s32 %v128, %v130
    %v132 = vld [vmem:[#allocation4] sm:$0xff]
    %v133 = vld [vmem:[#allocation4 + $0x8] sm:$0xff]
    %v134 = vld [vmem:[%s3] sm:$0xff]
    %v135 = vld [vmem:[%s3 + $0x8] sm:$0xff]
    %136 = vset.pattern.permute.xlu0 0
    %137 = vperm.xlu0 %136, %v134
    %v138 = vpop.permute.xlu0 %137
    %139 = vset.pattern.permute.xlu0 0
    %140 = vperm.xlu0 %139, %v135
    %v141 = vpop.permute.xlu0 %140
    %vm142 = vcmp.eq.s32.totalorder %v131, %v138
    %vm143 = vcmp.eq.s32.totalorder %v131, %v141
    %v144 = vsel %vm142, %v78, 0.0
    %v145 = vsel %vm143, %v80, 0.0
    %146 = vadd.xlane.f32.xlu0 %v144
    %v147 = vpop.xlane.xlu0 %146
    %148 = vadd.xlane.f32.xlu0 %v145
    %v149 = vpop.xlane.xlu0 %148
    %v150 = vadd.f32 %v132, %v147
    %v151 = vadd.f32 %v133, %v149
    %152 = vst.msk [vmem:[#allocation4] sm:$0xff] %vm122, %v150
    %153 = vst.msk [vmem:[#allocation4 + $0x8] sm:$0xff] %vm122, %v151
    // Predicated region
    $region26: #{_lambda_.5} parent=1 // pred_check
      %p154 = pneg %p23
    $region27: #{_lambda_.5} parent=1 // pred_check_branch
      %156 = sbr.rel (%p154) target = $region29
    $region28: #{_lambda_.5} parent=1 // pred_region
      %v157 = vld [vmem:[#allocation2] sm:$0xff]
      %v158 = vld [vmem:[#allocation2 + $0x8] sm:$0xff]
      %v159 = vld [vmem:[#allocation3] sm:$0xff]
      %v160 = vld [vmem:[#allocation3 + $0x8] sm:$0xff]
      %v161 = vlog2.pop %v159
      %v162 = vmul.f32 %v161, 0.6931472
      %v163 = vlog2.pop %v160
      %v164 = vmul.f32 %v163, 0.6931472
      %v165 = vadd.f32 %v157, %v162
      %v166 = vadd.f32 %v158, %v164
      %v167 = vld [vmem:[%s3] sm:$0xff]
      %v168 = vld [vmem:[%s3 + $0x8] sm:$0xff]
      %vm169 = vcmp.ne.s32.totalorder %v167, 4294967295
      %vm170 = vcmp.ne.s32.totalorder %v168, 4294967295
      %v171 = vsel %vm169, 1, 0
      %v172 = vsel %vm170, 1, 0
      %v173 = vcvt.s32.f32 %v171
      %v174 = vcvt.s32.f32 %v172
      %v175 = vld [vmem:[#allocation5] sm:$0x1]
      %v176 = vld [vmem:[#allocation4] sm:$0xff]
      %v177 = vld [vmem:[#allocation4 + $0x8] sm:$0xff]
      %v178 = vsub.f32 %v165, %v176
      %v179 = vsub.f32 %v166, %v177
      %v180 = vmul.f32 %v178, %v173
      %v181 = vmul.f32 %v179, %v174
      %v182 = vsel %vm122, %v180, 0.0
      %v183 = vsel %vm122, %v181, 0.0
      %v184 = vadd.f32 %v182, %v183
      %v185 = vrot.slane %v184, 4
      %v186 = vadd.f32 %v184, %v185
      %v187 = vrot.slane %v186, 2
      %v188 = vadd.f32 %v186, %v187
      %v189 = vrot.slane %v188, 1
      %v190 = vadd.f32 %v188, %v189
      %v191 = vadd.f32 %v175, %v190
      %vm192 = vcmask 0
      %193 = vst.msk [vmem:[#allocation5] sm:$0x1] %vm192, %v191
      %v194 = vld [vmem:[#allocation6] sm:$0x1]
      %v195 = vsel %vm122, %v173, 0.0
      %v196 = vsel %vm122, %v174, 0.0
      %v197 = vadd.f32 %v195, %v196
      %v198 = vrot.slane %v197, 4
      %v199 = vadd.f32 %v197, %v198
      %v200 = vrot.slane %v199, 2
      %v201 = vadd.f32 %v199, %v200
      %v202 = vrot.slane %v201, 1
      %v203 = vadd.f32 %v201, %v202
      %v204 = vadd.f32 %v194, %v203
      %205 = vst.msk [vmem:[#allocation6] sm:$0x1] %vm192, %v204
    $region29: #{_lambda_.5} parent=1 // pred_fallthru
      _
    // Predicated region
    $region30: #{_lambda_.5} parent=1 // pred_check
      _
    $region31: #{_lambda_.5} parent=1 // pred_check_branch
      %207 = sbr.rel (%p24) target = $region33
    $region32: #{_lambda_.5} parent=1 // pred_region
      %v208 = vld [vmem:[#allocation5] sm:$0x1]
      %vm209 = vcmask 0
      %210 = vst.msk [vmem:[#allocation7] sm:$0x1] %vm209, %v208
      %v211 = vld [vmem:[#allocation6] sm:$0x1]
      %212 = vst.msk [vmem:[#allocation9] sm:$0x1] %vm209, %v211
    $region33: #{_lambda_.5} parent=1 // pred_fallthru
      _
    // Predicated region
    $region34: #{_lambda_.5} parent=1 // pred_check
      _
    $region35: #{_lambda_.5} parent=1 // pred_check_branch
      %214 = sbr.rel (0) target = $region37
    $region36: #{_lambda_.5} parent=1 // pred_region
      %216 = vsyncadd [#allocation8], 0
      %s218 = sshll.u32 [#allocation7], 4
      %s219 = int_to_ptr.vmem [resolvable:$true] %s218
      %s220 = sshll.u32 %s4, 4
      %s221 = int_to_ptr.hbm [resolvable:$true] %s220
      %223 = dma.vmem_to_hbm [thread:$0]  %s219, 16, %s221, [#allocation8]
    $region37: #{_lambda_.5} parent=1 // pred_fallthru
      _
    // Predicated region
    $region38: #{_lambda_.5} parent=1 // pred_check
      _
    $region39: #{_lambda_.5} parent=1 // pred_check_branch
      %225 = sbr.rel (0) target = $region41
    $region40: #{_lambda_.5} parent=1 // pred_region
      %227 = vsyncadd [#allocation10], 0
      %s229 = sshll.u32 [#allocation9], 4
      %s230 = int_to_ptr.vmem [resolvable:$true] %s229
      %s231 = sshll.u32 %s5, 4
      %s232 = int_to_ptr.hbm [resolvable:$true] %s231
      %234 = dma.vmem_to_hbm [thread:$0]  %s230, 16, %s232, [#allocation10]
    $region41: #{_lambda_.5} parent=1 // pred_fallthru
      _
    // Predicated region
    $region42: #{_lambda_.5} parent=1 // pred_check
      _
    $region43: #{_lambda_.5} parent=1 // pred_check_branch
      %236 = sbr.rel (0) target = $region45
    $region44: #{_lambda_.5} parent=1 // pred_region
      %238 = dma.done [#allocation8], 16
    $region45: #{_lambda_.5} parent=1 // pred_fallthru
      _
    // Predicated region
    $region46: #{_lambda_.5} parent=1 // pred_check
      _
    $region47: #{_lambda_.5} parent=1 // pred_check_branch
      %240 = sbr.rel (0) target = $region49
    $region48: #{_lambda_.5} parent=1 // pred_region
      %242 = dma.done [#allocation10], 16
    $region49: #{_lambda_.5} parent=1 // pred_fallthru
      _
    %243 = vsyncpa [#allocation8], 1
    %244 = vsyncpa [#allocation10], 1

// kernel: _lambda_.4
$region0: #{_lambda_.4}
  #allocation0 [shape = 'u32[]', space=smem, size = 0x4, offset = 0x4, fixed_abs, tag = 'smem constant byte address 0x4 - core index']
  #allocation1 [shape = 'u32[72,128]{1,0:T(1,128)}', space=vmem, size = 0x9000, scoped, tag = 'internal scratch']
  #allocation2 [shape = 'f32[8,32]{1,0:T(8,128)}', space=vmem, size = 0x1000, scoped, tag = 'scratch operand']
  %s0 = inlined_call_operand.vmem [shape: f32[2,8,32], index: 0, kind: input, shape index: {}, may-alias: {0,1}]
  %s1 = inlined_call_operand.vmem [shape: f32[2,8,32], index: 1, kind: input, shape index: {}, may-alias: {0,1}]
  %s2 = inlined_call_operand.vmem [shape: bf16[32,32], index: 2, kind: input, shape index: {}]
  %s3 = inlined_call_operand.vmem [shape: f32[1,32], index: 3, kind: input, shape index: {}]
  %s4 = inlined_call_operand.vmem [shape: bf16[32,64], index: 4, kind: input, shape index: {}]
  %s5 = inlined_call_operand.vmem [shape: f32[1,64], index: 5, kind: input, shape index: {}]
  %s6 = inlined_call_operand.vmem [shape: bf16[32,32], index: 6, kind: input, shape index: {}]
  %s7 = inlined_call_operand.vmem [shape: f32[1,32], index: 7, kind: input, shape index: {}]
  %s8 = inlined_call_operand.vmem [shape: f32[1,32], index: 8, kind: input, shape index: {}]
  %s9 = inlined_call_operand.vmem [shape: f32[1,32], index: 9, kind: input, shape index: {}]
  %s10 = inlined_call_operand.vmem [shape: bf16[32,64], index: 10, kind: input, shape index: {}]
  %s11 = inlined_call_operand.vmem [shape: f32[1,64], index: 11, kind: input, shape index: {}]
  %s12 = inlined_call_operand.vmem [shape: bf16[64,32], index: 12, kind: input, shape index: {}]
  %s13 = inlined_call_operand.vmem [shape: f32[1,32], index: 13, kind: input, shape index: {}]
  %s14 = inlined_call_operand.vmem [shape: f32[1,32], index: 14, kind: input, shape index: {}]
  %s15 = inlined_call_operand.vmem [shape: f32[1,32], index: 15, kind: input, shape index: {}]
  %s16 = inlined_call_operand.vmem [shape: f32[2,8,32], index: 16, kind: output, shape index: {}]
  %s17 = sld [smem:[#allocation0]]
  $region97: #{_lambda_.4} parent=0
    _
  %s19 = ssub.s32 1, %s17
  %s20 = scalar_select 0, %s19, %s17
  loop: start=0, step=1, limit=4
  $region2: #{_lambda_.4} parent=0 // loop_pre_header
    _
  $region3: #{_lambda_.4} parent=0 // loop_header
    %s22 = sphi 0, %s26
    %p23 = scmp.ge.s32.totalorder %s22, 4
    %s29 = sphi 0, %s41
    %s30 = sphi 0, %s37
    %s31 = sphi 0, %s29
    %s32 = sphi 0, %s30
    %s33 = sphi 0, %s31
    %s34 = sphi 0, %s32
    %s46 = sphi 0, %s48
    %s49 = sphi 0, %s46
    %s50 = sphi 0, %s49
    %s66 = sphi 0, %s50
    %s72 = sphi 0, %s74
    %s75 = sphi 0, %s72
    %s76 = sphi 0, %s75
    %s92 = sphi 0, %s76
    %s96 = sphi 0, %s96
    %s98 = sphi 0, %s96
    %s99 = sphi 0, %s98
    %s113 = sphi 0, %s99
    %s117 = sphi 0, %s117
    %s119 = sphi 0, %s117
    %s120 = sphi 0, %s119
    %s134 = sphi 0, %s120
    %s138 = sphi 0, %s138
    %s140 = sphi 0, %s138
    %s141 = sphi 0, %s140
    %s155 = sphi 0, %s141
    %s159 = sphi 0, %s159
    %s161 = sphi 0, %s159
    %s162 = sphi 0, %s161
    %s176 = sphi 0, %s162
    %s180 = sphi 0, %s180
    %s182 = sphi 0, %s180
    %s183 = sphi 0, %s182
    %s197 = sphi 0, %s183
    %s201 = sphi 0, %s201
    %s203 = sphi 0, %s201
    %s204 = sphi 0, %s203
    %s218 = sphi 0, %s204
    %s222 = sphi 0, %s222
    %s224 = sphi 0, %s222
    %s225 = sphi 0, %s224
    %s239 = sphi 0, %s225
    %s243 = sphi 0, %s243
    %s245 = sphi 0, %s243
    %s246 = sphi 0, %s245
    %s260 = sphi 0, %s246
    %s264 = sphi 0, %s264
    %s266 = sphi 0, %s264
    %s267 = sphi 0, %s266
    %s281 = sphi 0, %s267
    %s285 = sphi 0, %s285
    %s287 = sphi 0, %s285
    %s288 = sphi 0, %s287
    %s302 = sphi 0, %s288
    %s306 = sphi 0, %s306
    %s308 = sphi 0, %s306
    %s309 = sphi 0, %s308
    %s323 = sphi 0, %s309
    %s327 = sphi 0, %s327
    %s329 = sphi 0, %s327
    %s330 = sphi 0, %s329
    %s344 = sphi 0, %s330
    %s348 = sphi 0, %s348
    %s350 = sphi 0, %s348
    %s351 = sphi 0, %s350
    %s365 = sphi 0, %s351
    %s369 = sphi 0, %s369
    %s371 = sphi 0, %s369
    %s372 = sphi 0, %s371
    %s386 = sphi 0, %s372
    %s394 = sphi 0, %s396
    %s397 = sphi 0, %s394
    %s398 = sphi 0, %s397
    %s414 = sphi 0, %s398
  $region4: #{_lambda_.4} parent=0 // loop_header_branch
    %25 = sbr.rel (%p23) target = $region8
  $region5: #{_lambda_.4} parent=0 // loop_body
    %s27 = ssub.s32 %s22, 1
    %s28 = ssub.s32 %s22, 2
    %s35 = sadd.s32 1, %s30
    %p36 = scmp.ge.s32.totalorder %s35, 1
    %s37 = scalar_select %p36, 0, %s35
    %s38 = sadd.s32 1, %s29
    %s39 = scalar_select %p36, %s38, %s29
    %p40 = scmp.ge.s32.totalorder %s39, 2
    %s41 = scalar_select %p40, 0, %s39
    %s42 = ssub.s32 %s29, %s41
    %s43 = ssub.s32 %s30, %s37
    %s44 = sor.u32 %s42, %s43
    %p45 = scmp.eq.s32.totalorder %s44, 0
    %s47 = sadd.s32 %s46, 1
    %s48 = scalar_select %p45, %s46, %s47
    %p51 = pneg %p45
    %p52 = scmp.eq.s32.totalorder %s22, 1
    %p53 = por %p51, %p52
    %p54 = scmp.ne.s32.totalorder %s46, %s49
    %p55 = scmp.eq.s32.totalorder %s22, 0
    %p56 = por %p54, %p55
    %p57 = scmp.ne.s32.totalorder %s46, %s49
    %p58 = scmp.eq.s32.totalorder %s27, 1
    %p59 = por %p57, %p58
    %p60 = scmp.ne.s32.totalorder %s49, %s50
    %p61 = scmp.eq.s32.totalorder %s27, 0
    %p62 = por %p60, %p61
    %p63 = scmp.ne.s32.totalorder %s49, %s50
    %p64 = scmp.eq.s32.totalorder %s28, 1
    %p65 = por %p63, %p64
    %p67 = scmp.ne.s32.totalorder %s50, %s66
    %p68 = scmp.eq.s32.totalorder %s28, 0
    %p69 = por %p67, %p68
    %s70 = ssub.s32 %s29, %s41
    %p71 = scmp.eq.s32.totalorder %s70, 0
    %s73 = sadd.s32 %s72, 1
    %s74 = scalar_select %p71, %s72, %s73
    %p77 = pneg %p71
    %p78 = scmp.eq.s32.totalorder %s22, 1
    %p79 = por %p77, %p78
    %p80 = scmp.ne.s32.totalorder %s72, %s75
    %p81 = scmp.eq.s32.totalorder %s22, 0
    %p82 = por %p80, %p81
    %p83 = scmp.ne.s32.totalorder %s72, %s75
    %p84 = scmp.eq.s32.totalorder %s27, 1
    %p85 = por %p83, %p84
    %p86 = scmp.ne.s32.totalorder %s75, %s76
    %p87 = scmp.eq.s32.totalorder %s27, 0
    %p88 = por %p86, %p87
    %p89 = scmp.ne.s32.totalorder %s75, %s76
    %p90 = scmp.eq.s32.totalorder %s28, 1
    %p91 = por %p89, %p90
    %p93 = scmp.ne.s32.totalorder %s76, %s92
    %p94 = scmp.eq.s32.totalorder %s28, 0
    %p95 = por %p93, %p94
    %s97 = sadd.s32 %s96, 1
    %p100 = scmp.eq.s32.totalorder %s22, 1
    %p101 = scmp.ne.s32.totalorder %s96, %s98
    %p102 = scmp.eq.s32.totalorder %s22, 0
    %p103 = por %p101, %p102
    %p104 = scmp.ne.s32.totalorder %s96, %s98
    %p105 = scmp.eq.s32.totalorder %s27, 1
    %p106 = por %p104, %p105
    %p107 = scmp.ne.s32.totalorder %s98, %s99
    %p108 = scmp.eq.s32.totalorder %s27, 0
    %p109 = por %p107, %p108
    %p110 = scmp.ne.s32.totalorder %s98, %s99
    %p111 = scmp.eq.s32.totalorder %s28, 1
    %p112 = por %p110, %p111
    %p114 = scmp.ne.s32.totalorder %s99, %s113
    %p115 = scmp.eq.s32.totalorder %s28, 0
    %p116 = por %p114, %p115
    %s118 = sadd.s32 %s117, 1
    %p121 = scmp.eq.s32.totalorder %s22, 1
    %p122 = scmp.ne.s32.totalorder %s117, %s119
    %p123 = scmp.eq.s32.totalorder %s22, 0
    %p124 = por %p122, %p123
    %p125 = scmp.ne.s32.totalorder %s117, %s119
    %p126 = scmp.eq.s32.totalorder %s27, 1
    %p127 = por %p125, %p126
    %p128 = scmp.ne.s32.totalorder %s119, %s120
    %p129 = scmp.eq.s32.totalorder %s27, 0
    %p130 = por %p128, %p129
    %p131 = scmp.ne.s32.totalorder %s119, %s120
    %p132 = scmp.eq.s32.totalorder %s28, 1
    %p133 = por %p131, %p132
    %p135 = scmp.ne.s32.totalorder %s120, %s134
    %p136 = scmp.eq.s32.totalorder %s28, 0
    %p137 = por %p135, %p136
    %s139 = sadd.s32 %s138, 1
    %p142 = scmp.eq.s32.totalorder %s22, 1
    %p143 = scmp.ne.s32.totalorder %s138, %s140
    %p144 = scmp.eq.s32.totalorder %s22, 0
    %p145 = por %p143, %p144
    %p146 = scmp.ne.s32.totalorder %s138, %s140
    %p147 = scmp.eq.s32.totalorder %s27, 1
    %p148 = por %p146, %p147
    %p149 = scmp.ne.s32.totalorder %s140, %s141
    %p150 = scmp.eq.s32.totalorder %s27, 0
    %p151 = por %p149, %p150
    %p152 = scmp.ne.s32.totalorder %s140, %s141
    %p153 = scmp.eq.s32.totalorder %s28, 1
    %p154 = por %p152, %p153
    %p156 = scmp.ne.s32.totalorder %s141, %s155
    %p157 = scmp.eq.s32.totalorder %s28, 0
    %p158 = por %p156, %p157
    %s160 = sadd.s32 %s159, 1
    %p163 = scmp.eq.s32.totalorder %s22, 1
    %p164 = scmp.ne.s32.totalorder %s159, %s161
    %p165 = scmp.eq.s32.totalorder %s22, 0
    %p166 = por %p164, %p165
    %p167 = scmp.ne.s32.totalorder %s159, %s161
    %p168 = scmp.eq.s32.totalorder %s27, 1
    %p169 = por %p167, %p168
    %p170 = scmp.ne.s32.totalorder %s161, %s162
    %p171 = scmp.eq.s32.totalorder %s27, 0
    %p172 = por %p170, %p171
    %p173 = scmp.ne.s32.totalorder %s161, %s162
    %p174 = scmp.eq.s32.totalorder %s28, 1
    %p175 = por %p173, %p174
    %p177 = scmp.ne.s32.totalorder %s162, %s176
    %p178 = scmp.eq.s32.totalorder %s28, 0
    %p179 = por %p177, %p178
    %s181 = sadd.s32 %s180, 1
    %p184 = scmp.eq.s32.totalorder %s22, 1
    %p185 = scmp.ne.s32.totalorder %s180, %s182
    %p186 = scmp.eq.s32.totalorder %s22, 0
    %p187 = por %p185, %p186
    %p188 = scmp.ne.s32.totalorder %s180, %s182
    %p189 = scmp.eq.s32.totalorder %s27, 1
    %p190 = por %p188, %p189
    %p191 = scmp.ne.s32.totalorder %s182, %s183
    %p192 = scmp.eq.s32.totalorder %s27, 0
    %p193 = por %p191, %p192
    %p194 = scmp.ne.s32.totalorder %s182, %s183
    %p195 = scmp.eq.s32.totalorder %s28, 1
    %p196 = por %p194, %p195
    %p198 = scmp.ne.s32.totalorder %s183, %s197
    %p199 = scmp.eq.s32.totalorder %s28, 0
    %p200 = por %p198, %p199
    %s202 = sadd.s32 %s201, 1
    %p205 = scmp.eq.s32.totalorder %s22, 1
    %p206 = scmp.ne.s32.totalorder %s201, %s203
    %p207 = scmp.eq.s32.totalorder %s22, 0
    %p208 = por %p206, %p207
    %p209 = scmp.ne.s32.totalorder %s201, %s203
    %p210 = scmp.eq.s32.totalorder %s27, 1
    %p211 = por %p209, %p210
    %p212 = scmp.ne.s32.totalorder %s203, %s204
    %p213 = scmp.eq.s32.totalorder %s27, 0
    %p214 = por %p212, %p213
    %p215 = scmp.ne.s32.totalorder %s203, %s204
    %p216 = scmp.eq.s32.totalorder %s28, 1
    %p217 = por %p215, %p216
    %p219 = scmp.ne.s32.totalorder %s204, %s218
    %p220 = scmp.eq.s32.totalorder %s28, 0
    %p221 = por %p219, %p220
    %s223 = sadd.s32 %s222, 1
    %p226 = scmp.eq.s32.totalorder %s22, 1
    %p227 = scmp.ne.s32.totalorder %s222, %s224
    %p228 = scmp.eq.s32.totalorder %s22, 0
    %p229 = por %p227, %p228
    %p230 = scmp.ne.s32.totalorder %s222, %s224
    %p231 = scmp.eq.s32.totalorder %s27, 1
    %p232 = por %p230, %p231
    %p233 = scmp.ne.s32.totalorder %s224, %s225
    %p234 = scmp.eq.s32.totalorder %s27, 0
    %p235 = por %p233, %p234
    %p236 = scmp.ne.s32.totalorder %s224, %s225
    %p237 = scmp.eq.s32.totalorder %s28, 1
    %p238 = por %p236, %p237
    %p240 = scmp.ne.s32.totalorder %s225, %s239
    %p241 = scmp.eq.s32.totalorder %s28, 0
    %p242 = por %p240, %p241
    %s244 = sadd.s32 %s243, 1
    %p247 = scmp.eq.s32.totalorder %s22, 1
    %p248 = scmp.ne.s32.totalorder %s243, %s245
    %p249 = scmp.eq.s32.totalorder %s22, 0
    %p250 = por %p248, %p249
    %p251 = scmp.ne.s32.totalorder %s243, %s245
    %p252 = scmp.eq.s32.totalorder %s27, 1
    %p253 = por %p251, %p252
    %p254 = scmp.ne.s32.totalorder %s245, %s246
    %p255 = scmp.eq.s32.totalorder %s27, 0
    %p256 = por %p254, %p255
    %p257 = scmp.ne.s32.totalorder %s245, %s246
    %p258 = scmp.eq.s32.totalorder %s28, 1
    %p259 = por %p257, %p258
    %p261 = scmp.ne.s32.totalorder %s246, %s260
    %p262 = scmp.eq.s32.totalorder %s28, 0
    %p263 = por %p261, %p262
    %s265 = sadd.s32 %s264, 1
    %p268 = scmp.eq.s32.totalorder %s22, 1
    %p269 = scmp.ne.s32.totalorder %s264, %s266
    %p270 = scmp.eq.s32.totalorder %s22, 0
    %p271 = por %p269, %p270
    %p272 = scmp.ne.s32.totalorder %s264, %s266
    %p273 = scmp.eq.s32.totalorder %s27, 1
    %p274 = por %p272, %p273
    %p275 = scmp.ne.s32.totalorder %s266, %s267
    %p276 = scmp.eq.s32.totalorder %s27, 0
    %p277 = por %p275, %p276
    %p278 = scmp.ne.s32.totalorder %s266, %s267
    %p279 = scmp.eq.s32.totalorder %s28, 1
    %p280 = por %p278, %p279
    %p282 = scmp.ne.s32.totalorder %s267, %s281
    %p283 = scmp.eq.s32.totalorder %s28, 0
    %p284 = por %p282, %p283
    %s286 = sadd.s32 %s285, 1
    %p289 = scmp.eq.s32.totalorder %s22, 1
    %p290 = scmp.ne.s32.totalorder %s285, %s287
    %p291 = scmp.eq.s32.totalorder %s22, 0
    %p292 = por %p290, %p291
    %p293 = scmp.ne.s32.totalorder %s285, %s287
    %p294 = scmp.eq.s32.totalorder %s27, 1
    %p295 = por %p293, %p294
    %p296 = scmp.ne.s32.totalorder %s287, %s288
    %p297 = scmp.eq.s32.totalorder %s27, 0
    %p298 = por %p296, %p297
    %p299 = scmp.ne.s32.totalorder %s287, %s288
    %p300 = scmp.eq.s32.totalorder %s28, 1
    %p301 = por %p299, %p300
    %p303 = scmp.ne.s32.totalorder %s288, %s302
    %p304 = scmp.eq.s32.totalorder %s28, 0
    %p305 = por %p303, %p304
    %s307 = sadd.s32 %s306, 1
    %p310 = scmp.eq.s32.totalorder %s22, 1
    %p311 = scmp.ne.s32.totalorder %s306, %s308
    %p312 = scmp.eq.s32.totalorder %s22, 0
    %p313 = por %p311, %p312
    %p314 = scmp.ne.s32.totalorder %s306, %s308
    %p315 = scmp.eq.s32.totalorder %s27, 1
    %p316 = por %p314, %p315
    %p317 = scmp.ne.s32.totalorder %s308, %s309
    %p318 = scmp.eq.s32.totalorder %s27, 0
    %p319 = por %p317, %p318
    %p320 = scmp.ne.s32.totalorder %s308, %s309
    %p321 = scmp.eq.s32.totalorder %s28, 1
    %p322 = por %p320, %p321
    %p324 = scmp.ne.s32.totalorder %s309, %s323
    %p325 = scmp.eq.s32.totalorder %s28, 0
    %p326 = por %p324, %p325
    %s328 = sadd.s32 %s327, 1
    %p331 = scmp.eq.s32.totalorder %s22, 1
    %p332 = scmp.ne.s32.totalorder %s327, %s329
    %p333 = scmp.eq.s32.totalorder %s22, 0
    %p334 = por %p332, %p333
    %p335 = scmp.ne.s32.totalorder %s327, %s329
    %p336 = scmp.eq.s32.totalorder %s27, 1
    %p337 = por %p335, %p336
    %p338 = scmp.ne.s32.totalorder %s329, %s330
    %p339 = scmp.eq.s32.totalorder %s27, 0
    %p340 = por %p338, %p339
    %p341 = scmp.ne.s32.totalorder %s329, %s330
    %p342 = scmp.eq.s32.totalorder %s28, 1
    %p343 = por %p341, %p342
    %p345 = scmp.ne.s32.totalorder %s330, %s344
    %p346 = scmp.eq.s32.totalorder %s28, 0
    %p347 = por %p345, %p346
    %s349 = sadd.s32 %s348, 1
    %p352 = scmp.eq.s32.totalorder %s22, 1
    %p353 = scmp.ne.s32.totalorder %s348, %s350
    %p354 = scmp.eq.s32.totalorder %s22, 0
    %p355 = por %p353, %p354
    %p356 = scmp.ne.s32.totalorder %s348, %s350
    %p357 = scmp.eq.s32.totalorder %s27, 1
    %p358 = por %p356, %p357
    %p359 = scmp.ne.s32.totalorder %s350, %s351
    %p360 = scmp.eq.s32.totalorder %s27, 0
    %p361 = por %p359, %p360
    %p362 = scmp.ne.s32.totalorder %s350, %s351
    %p363 = scmp.eq.s32.totalorder %s28, 1
    %p364 = por %p362, %p363
    %p366 = scmp.ne.s32.totalorder %s351, %s365
    %p367 = scmp.eq.s32.totalorder %s28, 0
    %p368 = por %p366, %p367
    %s370 = sadd.s32 %s369, 1
    %p373 = scmp.eq.s32.totalorder %s22, 1
    %p374 = scmp.ne.s32.totalorder %s369, %s371
    %p375 = scmp.eq.s32.totalorder %s22, 0
    %p376 = por %p374, %p375
    %p377 = scmp.ne.s32.totalorder %s369, %s371
    %p378 = scmp.eq.s32.totalorder %s27, 1
    %p379 = por %p377, %p378
    %p380 = scmp.ne.s32.totalorder %s371, %s372
    %p381 = scmp.eq.s32.totalorder %s27, 0
    %p382 = por %p380, %p381
    %p383 = scmp.ne.s32.totalorder %s371, %s372
    %p384 = scmp.eq.s32.totalorder %s28, 1
    %p385 = por %p383, %p384
    %p387 = scmp.ne.s32.totalorder %s372, %s386
    %p388 = scmp.eq.s32.totalorder %s28, 0
    %p389 = por %p387, %p388
    %s390 = ssub.s32 %s29, %s41
    %s391 = ssub.s32 %s30, %s37
    %s392 = sor.u32 %s390, %s391
    %p393 = scmp.eq.s32.totalorder %s392, 0
    %s395 = sadd.s32 %s394, 1
    %s396 = scalar_select %p393, %s394, %s395
    %p399 = pneg %p393
    %p400 = scmp.eq.s32.totalorder %s22, 1
    %p401 = por %p399, %p400
    %p402 = scmp.ne.s32.totalorder %s394, %s397
    %p403 = scmp.eq.s32.totalorder %s22, 0
    %p404 = por %p402, %p403
    %p405 = scmp.ne.s32.totalorder %s394, %s397
    %p406 = scmp.eq.s32.totalorder %s27, 1
    %p407 = por %p405, %p406
    %p408 = scmp.ne.s32.totalorder %s397, %s398
    %p409 = scmp.eq.s32.totalorder %s27, 0
    %p410 = por %p408, %p409
    %p411 = scmp.ne.s32.totalorder %s397, %s398
    %p412 = scmp.eq.s32.totalorder %s28, 1
    %p413 = por %p411, %p412
    %p415 = scmp.ne.s32.totalorder %s398, %s414
    %p416 = scmp.eq.s32.totalorder %s28, 0
    %p417 = por %p415, %p416
    %p418 = scmp.le.s32.totalorder 1, %s22
    %p419 = scmp.lt.s32.totalorder %s22, 3
    %p420 = pnand %p418, %p419
    %p421 = pneg %p420
    // Predicated region
    $region9: #{_lambda_.4} parent=5 // pred_check
      _
    $region10: #{_lambda_.4} parent=5 // pred_check_branch
      %423 = sbr.rel (%p420) target = $region12
    $region11: #{_lambda_.4} parent=5 // pred_region
      %s424 = ssub.s32 %s22, 1
      // Predicated region
      $region13: #{_lambda_.4} parent=11 // pred_check
        %p425 = pneg %p109
      $region14: #{_lambda_.4} parent=11 // pred_check_branch
        %427 = sbr.rel (%p425) target = $region16
      $region15: #{_lambda_.4} parent=11 // pred_region
        _
      $region16: #{_lambda_.4} parent=11 // pred_fallthru
        _
      // Predicated region
      $region17: #{_lambda_.4} parent=11 // pred_check
        %p428 = pneg %p130
      $region18: #{_lambda_.4} parent=11 // pred_check_branch
        %430 = sbr.rel (%p428) target = $region20
      $region19: #{_lambda_.4} parent=11 // pred_region
        _
      $region20: #{_lambda_.4} parent=11 // pred_fallthru
        _
      // Predicated region
      $region21: #{_lambda_.4} parent=11 // pred_check
        %p431 = pneg %p151
      $region22: #{_lambda_.4} parent=11 // pred_check_branch
        %433 = sbr.rel (%p431) target = $region24
      $region23: #{_lambda_.4} parent=11 // pred_region
        _
      $region24: #{_lambda_.4} parent=11 // pred_fallthru
        _
      // Predicated region
      $region25: #{_lambda_.4} parent=11 // pred_check
        %p434 = pneg %p172
      $region26: #{_lambda_.4} parent=11 // pred_check_branch
        %436 = sbr.rel (%p434) target = $region28
      $region27: #{_lambda_.4} parent=11 // pred_region
        _
      $region28: #{_lambda_.4} parent=11 // pred_fallthru
        _
      // Predicated region
      $region29: #{_lambda_.4} parent=11 // pred_check
        %p437 = pneg %p193
      $region30: #{_lambda_.4} parent=11 // pred_check_branch
        %439 = sbr.rel (%p437) target = $region32
      $region31: #{_lambda_.4} parent=11 // pred_region
        _
      $region32: #{_lambda_.4} parent=11 // pred_fallthru
        _
      // Predicated region
      $region33: #{_lambda_.4} parent=11 // pred_check
        %p440 = pneg %p214
      $region34: #{_lambda_.4} parent=11 // pred_check_branch
        %442 = sbr.rel (%p440) target = $region36
      $region35: #{_lambda_.4} parent=11 // pred_region
        _
      $region36: #{_lambda_.4} parent=11 // pred_fallthru
        _
      // Predicated region
      $region37: #{_lambda_.4} parent=11 // pred_check
        %p443 = pneg %p235
      $region38: #{_lambda_.4} parent=11 // pred_check_branch
        %445 = sbr.rel (%p443) target = $region40
      $region39: #{_lambda_.4} parent=11 // pred_region
        _
      $region40: #{_lambda_.4} parent=11 // pred_fallthru
        _
      // Predicated region
      $region41: #{_lambda_.4} parent=11 // pred_check
        %p446 = pneg %p256
      $region42: #{_lambda_.4} parent=11 // pred_check_branch
        %448 = sbr.rel (%p446) target = $region44
      $region43: #{_lambda_.4} parent=11 // pred_region
        _
      $region44: #{_lambda_.4} parent=11 // pred_fallthru
        _
      // Predicated region
      $region45: #{_lambda_.4} parent=11 // pred_check
        %p449 = pneg %p277
      $region46: #{_lambda_.4} parent=11 // pred_check_branch
        %451 = sbr.rel (%p449) target = $region48
      $region47: #{_lambda_.4} parent=11 // pred_region
        _
      $region48: #{_lambda_.4} parent=11 // pred_fallthru
        _
      // Predicated region
      $region49: #{_lambda_.4} parent=11 // pred_check
        %p452 = pneg %p298
      $region50: #{_lambda_.4} parent=11 // pred_check_branch
        %454 = sbr.rel (%p452) target = $region52
      $region51: #{_lambda_.4} parent=11 // pred_region
        _
      $region52: #{_lambda_.4} parent=11 // pred_fallthru
        _
      // Predicated region
      $region53: #{_lambda_.4} parent=11 // pred_check
        %p455 = pneg %p319
      $region54: #{_lambda_.4} parent=11 // pred_check_branch
        %457 = sbr.rel (%p455) target = $region56
      $region55: #{_lambda_.4} parent=11 // pred_region
        _
      $region56: #{_lambda_.4} parent=11 // pred_fallthru
        _
      // Predicated region
      $region57: #{_lambda_.4} parent=11 // pred_check
        %p458 = pneg %p340
      $region58: #{_lambda_.4} parent=11 // pred_check_branch
        %460 = sbr.rel (%p458) target = $region60
      $region59: #{_lambda_.4} parent=11 // pred_region
        _
      $region60: #{_lambda_.4} parent=11 // pred_fallthru
        _
      // Predicated region
      $region61: #{_lambda_.4} parent=11 // pred_check
        %p461 = pneg %p361
      $region62: #{_lambda_.4} parent=11 // pred_check_branch
        %463 = sbr.rel (%p461) target = $region64
      $region63: #{_lambda_.4} parent=11 // pred_region
        _
      $region64: #{_lambda_.4} parent=11 // pred_fallthru
        _
      // Predicated region
      $region65: #{_lambda_.4} parent=11 // pred_check
        %p464 = pneg %p382
      $region66: #{_lambda_.4} parent=11 // pred_check_branch
        %466 = sbr.rel (%p464) target = $region68
      $region67: #{_lambda_.4} parent=11 // pred_region
        _
      $region68: #{_lambda_.4} parent=11 // pred_fallthru
        _
    $region12: #{_lambda_.4} parent=5 // pred_fallthru
      _
    %p467 = scmp.lt.s32.totalorder %s22, 2
    // Predicated region
    $region69: #{_lambda_.4} parent=5 // pred_check
      %p468 = pneg %p467
    $region70: #{_lambda_.4} parent=5 // pred_check_branch
      %470 = sbr.rel (%p468) target = $region72
    $region71: #{_lambda_.4} parent=5 // pred_region
      // Predicated region
      $region73: #{_lambda_.4} parent=71 // pred_check
        %p471 = pneg %p56
      $region74: #{_lambda_.4} parent=71 // pred_check_branch
        %473 = sbr.rel (%p471) target = $region76
      $region75: #{_lambda_.4} parent=71 // pred_region
        %p474 = scmp.lt.s32.totalorder %s29, 1
        %s475 = scalar_select %p474, %s29, 1
        %p476 = scmp.lt.s32.totalorder %s30, 0
        %s477 = scalar_select %p476, %s30, 0
        %s478 = sadd.s32 %s477, %s475
        %s479 = smul.addr %s478, 8
        %s480 = scalar_lea.vmem %s0, %s479
      $region76: #{_lambda_.4} parent=71 // pred_fallthru
        _
      // Predicated region
      $region77: #{_lambda_.4} parent=71 // pred_check
        %p481 = pneg %p82
      $region78: #{_lambda_.4} parent=71 // pred_check_branch
        %483 = sbr.rel (%p481) target = $region80
      $region79: #{_lambda_.4} parent=71 // pred_region
        %p484 = scmp.lt.s32.totalorder %s29, 1
        %s485 = scalar_select %p484, %s29, 1
        %s486 = smul.addr %s485, 8
        %s487 = scalar_lea.vmem %s1, %s486
      $region80: #{_lambda_.4} parent=71 // pred_fallthru
        _
    $region72: #{_lambda_.4} parent=5 // pred_fallthru
      _
    %p488 = scmp.le.s32.totalorder 1, %s22
    %p489 = scmp.lt.s32.totalorder %s22, 3
    %p490 = pnand %p488, %p489
    %p491 = pneg %p490
    // Predicated region
    $region81: #{_lambda_.4} parent=5 // pred_check
      _
    $region82: #{_lambda_.4} parent=5 // pred_check_branch
      %493 = sbr.rel (%p490) target = $region84
    $region83: #{_lambda_.4} parent=5 // pred_region
      %s494 = ssub.s32 %s22, 1
      %p495 = scmp.lt.s32.totalorder %s31, 1
      %s496 = scalar_select %p495, %s31, 1
      %p497 = scmp.lt.s32.totalorder %s32, 0
      %s498 = scalar_select %p497, %s32, 0
      %s499 = sadd.s32 %s498, %s496
      %s500 = smul.addr %s499, 8
      %s501 = scalar_lea.vmem %s0, %s500
      %p502 = pneg %p62
      %p503 = pneg %p59
      %p504 = scmp.lt.s32.totalorder %s31, 1
      %s505 = scalar_select %p504, %s31, 1
      %s506 = smul.addr %s505, 8
      %s507 = scalar_lea.vmem %s1, %s506
      %p508 = pneg %p88
      %p509 = pneg %p85
      %p510 = pneg %p109
      %p511 = pneg %p106
      %p512 = pneg %p130
      %p513 = pneg %p127
      %p514 = pneg %p151
      %p515 = pneg %p148
      %p516 = pneg %p172
      %p517 = pneg %p169
      %p518 = pneg %p193
      %p519 = pneg %p190
      %p520 = pneg %p214
      %p521 = pneg %p211
      %p522 = pneg %p235
      %p523 = pneg %p232
      %p524 = pneg %p256
      %p525 = pneg %p253
      %p526 = pneg %p277
      %p527 = pneg %p274
      %p528 = pneg %p298
      %p529 = pneg %p295
      %p530 = pneg %p319
      %p531 = pneg %p316
      %p532 = pneg %p340
      %p533 = pneg %p337
      %p534 = pneg %p361
      %p535 = pneg %p358
      %p536 = pneg %p382
      %p537 = pneg %p379
      %p538 = pneg %p410
      %p539 = pneg %p407
      %p540 = scmp.lt.s32.totalorder %s31, 1
      %s541 = scalar_select %p540, %s31, 1
      %p542 = scmp.lt.s32.totalorder %s32, 0
      %s543 = scalar_select %p542, %s32, 0
      %s544 = sadd.s32 %s543, %s541
      %s545 = smul.addr %s544, 8
      %s546 = scalar_lea.vmem %s16, %s545
      %p547 = scmp.lt.s32.totalorder %s31, 1
      %s548 = scalar_select %p547, %s31, 1
      %p549 = scmp.lt.s32.totalorder %s32, 0
      %s550 = scalar_select %p549, %s32, 0
      %s551 = sadd.s32 %s550, %s548
      %s552 = smul.addr %s551, 8
      %s553 = scalar_lea.vmem %s0, %s552
      %p554 = scmp.lt.s32.totalorder %s31, 1
      %s555 = scalar_select %p554, %s31, 1
      %s556 = smul.addr %s555, 8
      %s557 = scalar_lea.vmem %s1, %s556
      %p558 = scmp.lt.s32.totalorder %s31, 1
      %s559 = scalar_select %p558, %s31, 1
      %p560 = scmp.lt.s32.totalorder %s32, 0
      %s561 = scalar_select %p560, %s32, 0
      %s562 = sadd.s32 %s561, %s559
      %s563 = smul.addr %s562, 8
      %s564 = scalar_lea.vmem %s16, %s563
      %v566 = vld [vmem:[%s553] sm:$0xff]
      %v567 = vld [vmem:[%s557] sm:$0xff]
      %v568 = vpack.c.bf16 %v566, %v566
      %v569 = vld [vmem:[%s2] sm:$0xf]
      %v570 = vld [vmem:[%s2 + $0x4] sm:$0xf]
      %v571 = vld [vmem:[%s2 + $0x8] sm:$0xf]
      %v572 = vld [vmem:[%s2 + $0xc] sm:$0xf]
      %v573 = vld [vmem:[%s3] sm:$0x1]
      %v575 = vperm.slane %v573, 0
      %v581 = vunpack.c.l.b16 %v569
      %v582 = vunpack.c.l.b16 %v570
      %v583 = vunpack.c.l.b16 %v571
      %v584 = vunpack.c.l.b16 %v572
      %v585 = vpack.c.b16 %v582, %v581
      %v586 = vpack.c.b16 %v584, %v583
      %vm589 = vcmask 261120
      %v591 = vsel %vm589, %v568, 0
      %593 = vmatpush.bf16.msra.mxu0 0
      %594 = vmatpush.bf16.msra.mxu0 0
      %595 = vmatpush.bf16.msra.mxu0 0
      %596 = vmatpush.bf16.msra.mxu0 0
      %597 = vmatpush.bf16.msra.mxu0 0
      %598 = vmatpush.bf16.msra.mxu0 0
      %599 = vmatpush.bf16.msra.mxu0 %v586
      %600 = vmatpush.bf16.msra.mxu0 %v585
      %601 = vmatmul.bf16.gmra.mxu0 %v591
      %v602 = vpop.f32.mrf.mxu0
      %v603 = vadd.f32 %v575, %v602
      %v604 = vpop.f32.mrf.mxu0
      %605 = vdwg.mxu0
      %v606 = vpack.c.bf16 %v567, %v567
      %v607 = vld [vmem:[%s4] sm:$0xf]
      %v608 = vld [vmem:[%s4 + $0x4] sm:$0xf]
      %v609 = vld [vmem:[%s4 + $0x8] sm:$0xf]
      %v610 = vld [vmem:[%s4 + $0xc] sm:$0xf]
      %v611 = vld [vmem:[%s5] sm:$0x1]
      %v613 = vperm.slane %v611, 0
      %v619 = vunpack.c.l.b16 %v607
      %v620 = vunpack.c.l.b16 %v608
      %v621 = vunpack.c.l.b16 %v609
      %v622 = vunpack.c.l.b16 %v610
      %v623 = vpack.c.b16 %v620, %v619
      %v624 = vpack.c.b16 %v622, %v621
      %v628 = vsel %vm589, %v606, 0
      %630 = vmatpush.bf16.msra.mxu0 0
      %631 = vmatpush.bf16.msra.mxu0 0
      %632 = vmatpush.bf16.msra.mxu0 0
      %633 = vmatpush.bf16.msra.mxu0 0
      %634 = vmatpush.bf16.msra.mxu0 0
      %635 = vmatpush.bf16.msra.mxu0 0
      %636 = vmatpush.bf16.msra.mxu0 %v624
      %637 = vmatpush.bf16.msra.mxu0 %v623
      %638 = vmatmul.bf16.gmra.mxu0 %v628
      %v639 = vpop.f32.mrf.mxu0
      %v640 = vadd.f32 %v613, %v639
      %v641 = vpop.f32.mrf.mxu0
      %642 = vdwg.mxu0
      %v643 = vlaneseq
      %v644 = vshrl.u32 %v643, 7
      %s645 = smul.u32 %s32, 8
      %v646 = vstv %s645
      %v647 = vadd.s32 %v644, %v646
      %v648 = vlaneseq
      %v649 = vand.u32 %v648, 127
      %vm650 = vcmp.le.s32.totalorder %v649, %v647
      %vm651 = vcmp.lt.s32.totalorder %v647, 3
      %vm652 = vcmp.lt.s32.totalorder %v649, 3
      %vm653 = vmand %vm651, %vm652
      %vm654 = vmor %vm650, %vm653
      %v655 = vsel %vm654, 0.0, -10000.0
      %v656 = vpack.c.bf16 %v603, %v603
      %v657 = vpack.c.bf16 %v640, %v640
      %vm658 = vcmask 64512
      %v660 = vsel %vm658, %v656, 0
      %v663 = vsel %vm658, %v657, 0
      %665 = vmatpush.bf16.xpose.msra.mxu0 0
      %666 = vmatpush.bf16.xpose.msra.mxu0 0
      %667 = vmatpush.bf16.xpose.msra.mxu0 0
      %668 = vmatpush.bf16.xpose.msra.mxu0 0
      %669 = vmatpush.bf16.xpose.msra.mxu0 0
      %670 = vmatpush.bf16.xpose.msra.mxu0 0
      %671 = vmatpush.bf16.xpose.msra.mxu0 0
      %672 = vmatpush.bf16.xpose.msra.mxu0 %v663
      %673 = vmatmul.bf16.gmra.mxu0 %v660
      %v674 = vpop.f32.mrf.mxu0
      %v675 = vadd.f32 %v655, %v674
      %v676 = vpop.f32.mrf.mxu0
      %677 = vdwg.mxu0
      %v678 = vsel %vm658, %v675, -inf
      %679 = vmax.xlane.f32.xlu0 %v678
      %v680 = vpop.xlane.xlu0 %679
      %v681 = vsub.f32 %v675, %v680
      %v682 = vmul.f32 %v681, 1.442695
      %v683 = vpow.pop %v682
      %v684 = vsel %vm658, %v683, 0.0
      %685 = vadd.xlane.f32.xlu0 %v684
      %v686 = vpop.xlane.xlu0 %685
      %v687 = vrcp.pop %v686
      %v688 = vmul.f32 %v683, %v687
      %v689 = vpack.c.bf16 %v688, %v688
      %691 = vrot.lane.b32.xlu0 %v657, 96
      %v692 = vpop.permute.xlu0 %691
      %v694 = vsel %vm658, %v689, 0
      %vm696 = vcmask 1043456
      %v698 = vsel %vm696, %v692, 0
      %700 = vmatpush.bf16.msra.mxu0 0
      %701 = vmatpush.bf16.msra.mxu0 0
      %702 = vmatpush.bf16.msra.mxu0 0
      %703 = vmatpush.bf16.msra.mxu0 0
      %704 = vmatpush.bf16.msra.mxu0 0
      %705 = vmatpush.bf16.msra.mxu0 0
      %706 = vmatpush.bf16.msra.mxu0 0
      %707 = vmatpush.bf16.msra.mxu0 %v698
      %708 = vmatmul.bf16.gmra.mxu0 %v694
      %v709 = vpop.f32.mrf.mxu0
      %v710 = vadd.f32 0.0, %v709
      %v711 = vpop.f32.mrf.mxu0
      %712 = vdwg.mxu0
      %713 = vst.msk [vmem:[#allocation2] sm:$0xff] %vm658, %v710
      %715 = vrot.lane.b32.xlu0 %v656, 120
      %v716 = vpop.permute.xlu0 %715
      %717 = vrot.lane.b32.xlu0 %v657, 120
      %v718 = vpop.permute.xlu0 %717
      %v720 = vsel %vm658, %v716, 0
      %v723 = vsel %vm658, %v718, 0
      %725 = vmatpush.bf16.xpose.msra.mxu0 0
      %726 = vmatpush.bf16.xpose.msra.mxu0 0
      %727 = vmatpush.bf16.xpose.msra.mxu0 0
      %728 = vmatpush.bf16.xpose.msra.mxu0 0
      %729 = vmatpush.bf16.xpose.msra.mxu0 0
      %730 = vmatpush.bf16.xpose.msra.mxu0 0
      %731 = vmatpush.bf16.xpose.msra.mxu0 0
      %732 = vmatpush.bf16.xpose.msra.mxu0 %v723
      %733 = vmatmul.bf16.gmra.mxu0 %v720
      %v734 = vpop.f32.mrf.mxu0
      %v735 = vadd.f32 %v655, %v734
      %v736 = vpop.f32.mrf.mxu0
      %737 = vdwg.mxu0
      %v738 = vsel %vm658, %v735, -inf
      %739 = vmax.xlane.f32.xlu0 %v738
      %v740 = vpop.xlane.xlu0 %739
      %v741 = vsub.f32 %v735, %v740
      %v742 = vmul.f32 %v741, 1.442695
      %v743 = vpow.pop %v742
      %v744 = vsel %vm658, %v743, 0.0
      %745 = vadd.xlane.f32.xlu0 %v744
      %v746 = vpop.xlane.xlu0 %745
      %v747 = vrcp.pop %v746
      %v748 = vmul.f32 %v743, %v747
      %v749 = vpack.c.bf16 %v748, %v748
      %750 = vrot.lane.b32.xlu0 %v657, 88
      %v751 = vpop.permute.xlu0 %750
      %v753 = vsel %vm658, %v749, 0
      %v756 = vsel %vm696, %v751, 0
      %758 = vmatpush.bf16.msra.mxu0 0
      %759 = vmatpush.bf16.msra.mxu0 0
      %760 = vmatpush.bf16.msra.mxu0 0
      %761 = vmatpush.bf16.msra.mxu0 0
      %762 = vmatpush.bf16.msra.mxu0 0
      %763 = vmatpush.bf16.msra.mxu0 0
      %764 = vmatpush.bf16.msra.mxu0 0
      %765 = vmatpush.bf16.msra.mxu0 %v756
      %766 = vmatmul.bf16.gmra.mxu0 %v753
      %v767 = vpop.f32.mrf.mxu0
      %v768 = vadd.f32 0.0, %v767
      %v769 = vpop.f32.mrf.mxu0
      %770 = vdwg.mxu0
      %772 = vrot.lane.b32.xlu0 %v768, 8
      %v773 = vpop.permute.xlu0 %772
      %vm775 = vcmask 130112
      %776 = vst.msk [vmem:[#allocation2] sm:$0xff] %vm775, %v773
      %777 = vrot.lane.b32.xlu0 %v656, 112
      %v778 = vpop.permute.xlu0 %777
      %779 = vrot.lane.b32.xlu0 %v657, 112
      %v780 = vpop.permute.xlu0 %779
      %v782 = vsel %vm658, %v778, 0
      %v785 = vsel %vm658, %v780, 0
      %787 = vmatpush.bf16.xpose.msra.mxu0 0
      %788 = vmatpush.bf16.xpose.msra.mxu0 0
      %789 = vmatpush.bf16.xpose.msra.mxu0 0
      %790 = vmatpush.bf16.xpose.msra.mxu0 0
      %791 = vmatpush.bf16.xpose.msra.mxu0 0
      %792 = vmatpush.bf16.xpose.msra.mxu0 0
      %793 = vmatpush.bf16.xpose.msra.mxu0 0
      %794 = vmatpush.bf16.xpose.msra.mxu0 %v785
      %795 = vmatmul.bf16.gmra.mxu0 %v782
      %v796 = vpop.f32.mrf.mxu0
      %v797 = vadd.f32 %v655, %v796
      %v798 = vpop.f32.mrf.mxu0
      %799 = vdwg.mxu0
      %v800 = vsel %vm658, %v797, -inf
      %801 = vmax.xlane.f32.xlu0 %v800
      %v802 = vpop.xlane.xlu0 %801
      %v803 = vsub.f32 %v797, %v802
      %v804 = vmul.f32 %v803, 1.442695
      %v805 = vpow.pop %v804
      %v806 = vsel %vm658, %v805, 0.0
      %807 = vadd.xlane.f32.xlu0 %v806
      %v808 = vpop.xlane.xlu0 %807
      %v809 = vrcp.pop %v808
      %v810 = vmul.f32 %v805, %v809
      %v811 = vpack.c.bf16 %v810, %v810
      %812 = vrot.lane.b32.xlu0 %v657, 80
      %v813 = vpop.permute.xlu0 %812
      %v815 = vsel %vm658, %v811, 0
      %v818 = vsel %vm696, %v813, 0
      %820 = vmatpush.bf16.msra.mxu0 0
      %821 = vmatpush.bf16.msra.mxu0 0
      %822 = vmatpush.bf16.msra.mxu0 0
      %823 = vmatpush.bf16.msra.mxu0 0
      %824 = vmatpush.bf16.msra.mxu0 0
      %825 = vmatpush.bf16.msra.mxu0 0
      %826 = vmatpush.bf16.msra.mxu0 0
      %827 = vmatpush.bf16.msra.mxu0 %v818
      %828 = vmatmul.bf16.gmra.mxu0 %v815
      %v829 = vpop.f32.mrf.mxu0
      %v830 = vadd.f32 0.0, %v829
      %v831 = vpop.f32.mrf.mxu0
      %832 = vdwg.mxu0
      %834 = vrot.lane.b32.xlu0 %v830, 16
      %v835 = vpop.permute.xlu0 %834
      %vm837 = vcmask 195712
      %838 = vst.msk [vmem:[#allocation2] sm:$0xff] %vm837, %v835
      %839 = vrot.lane.b32.xlu0 %v656, 104
      %v840 = vpop.permute.xlu0 %839
      %841 = vrot.lane.b32.xlu0 %v657, 104
      %v842 = vpop.permute.xlu0 %841
      %v844 = vsel %vm658, %v840, 0
      %v847 = vsel %vm658, %v842, 0
      %849 = vmatpush.bf16.xpose.msra.mxu0 0
      %850 = vmatpush.bf16.xpose.msra.mxu0 0
      %851 = vmatpush.bf16.xpose.msra.mxu0 0
      %852 = vmatpush.bf16.xpose.msra.mxu0 0
      %853 = vmatpush.bf16.xpose.msra.mxu0 0
      %854 = vmatpush.bf16.xpose.msra.mxu0 0
      %855 = vmatpush.bf16.xpose.msra.mxu0 0
      %856 = vmatpush.bf16.xpose.msra.mxu0 %v847
      %857 = vmatmul.bf16.gmra.mxu0 %v844
      %v858 = vpop.f32.mrf.mxu0
      %v859 = vadd.f32 %v655, %v858
      %v860 = vpop.f32.mrf.mxu0
      %861 = vdwg.mxu0
      %v862 = vsel %vm658, %v859, -inf
      %863 = vmax.xlane.f32.xlu0 %v862
      %v864 = vpop.xlane.xlu0 %863
      %v865 = vsub.f32 %v859, %v864
      %v866 = vmul.f32 %v865, 1.442695
      %v867 = vpow.pop %v866
      %v868 = vsel %vm658, %v867, 0.0
      %869 = vadd.xlane.f32.xlu0 %v868
      %v870 = vpop.xlane.xlu0 %869
      %v871 = vrcp.pop %v870
      %v872 = vmul.f32 %v867, %v871
      %v873 = vpack.c.bf16 %v872, %v872
      %874 = vrot.lane.b32.xlu0 %v657, 72
      %v875 = vpop.permute.xlu0 %874
      %v877 = vsel %vm658, %v873, 0
      %v880 = vsel %vm696, %v875, 0
      %882 = vmatpush.bf16.msra.mxu0 0
      %883 = vmatpush.bf16.msra.mxu0 0
      %884 = vmatpush.bf16.msra.mxu0 0
      %885 = vmatpush.bf16.msra.mxu0 0
      %886 = vmatpush.bf16.msra.mxu0 0
      %887 = vmatpush.bf16.msra.mxu0 0
      %888 = vmatpush.bf16.msra.mxu0 0
      %889 = vmatpush.bf16.msra.mxu0 %v880
      %890 = vmatmul.bf16.gmra.mxu0 %v877
      %v891 = vpop.f32.mrf.mxu0
      %v892 = vadd.f32 0.0, %v891
      %v893 = vpop.f32.mrf.mxu0
      %894 = vdwg.mxu0
      %896 = vrot.lane.b32.xlu0 %v892, 24
      %v897 = vpop.permute.xlu0 %896
      %vm899 = vcmask 261312
      %900 = vst.msk [vmem:[#allocation2] sm:$0xff] %vm899, %v897
      %v901 = vld [vmem:[#allocation2] sm:$0xff]
      %v902 = vpack.c.bf16 %v901, %v901
      %v903 = vld [vmem:[%s6] sm:$0xf]
      %v904 = vld [vmem:[%s6 + $0x4] sm:$0xf]
      %v905 = vld [vmem:[%s6 + $0x8] sm:$0xf]
      %v906 = vld [vmem:[%s6 + $0xc] sm:$0xf]
      %v907 = vld [vmem:[%s7] sm:$0x1]
      %v909 = vperm.slane %v907, 0
      %v915 = vunpack.c.l.b16 %v903
      %v916 = vunpack.c.l.b16 %v904
      %v917 = vunpack.c.l.b16 %v905
      %v918 = vunpack.c.l.b16 %v906
      %v919 = vpack.c.b16 %v916, %v915
      %v920 = vpack.c.b16 %v918, %v917
      %v924 = vsel %vm589, %v902, 0
      %926 = vmatpush.bf16.msra.mxu0 0
      %927 = vmatpush.bf16.msra.mxu0 0
      %928 = vmatpush.bf16.msra.mxu0 0
      %929 = vmatpush.bf16.msra.mxu0 0
      %930 = vmatpush.bf16.msra.mxu0 0
      %931 = vmatpush.bf16.msra.mxu0 0
      %932 = vmatpush.bf16.msra.mxu0 %v920
      %933 = vmatpush.bf16.msra.mxu0 %v919
      %934 = vmatmul.bf16.gmra.mxu0 %v924
      %v935 = vpop.f32.mrf.mxu0
      %v936 = vadd.f32 %v909, %v935
      %v937 = vpop.f32.mrf.mxu0
      %938 = vdwg.mxu0
      %v939 = vadd.f32 %v566, %v936
      %v940 = vld [vmem:[%s8] sm:$0x1]
      %v941 = vld [vmem:[%s9] sm:$0x1]
      %v942 = vsel %vm589, %v939, 0.0
      %943 = vadd.xlane.f32.xlu0 %v942
      %v944 = vpop.xlane.xlu0 %943
      %v945 = vrcp.pop 32.0
      %v946 = vmul.f32 32.0, %v945
      %v947 = vsub.f32 1.0, %v946
      %v948 = vmul.f32 %v945, %v947
      %v949 = vadd.f32 %v945, %v948
      %vm950 = vweird.f32 %v945
      %v951 = vsel %vm950, %v945, %v949
      %v952 = vmul.f32 %v944, %v951
      %v953 = vsub.f32 %v939, %v952
      %v954 = vmul.f32 %v953, %v953
      %v955 = vsel %vm589, %v954, 0.0
      %956 = vadd.xlane.f32.xlu0 %v955
      %v957 = vpop.xlane.xlu0 %956
      %v958 = vmul.f32 %v957, %v951
      %v959 = vadd.f32 %v958, 1e-12
      %v960 = vrsqrt.pop %v959
      %v961 = vmul.f32 %v960, %v959
      %v962 = vmul.f32 %v961, %v960
      %v963 = vmul.f32 0.5, %v962
      %v964 = vsub.f32 1.5, %v963
      %v965 = vmul.f32 %v960, %v964
      %vm966 = vweird.f32 %v959
      %vm967 = vweird.f32 %v960
      %vm968 = vmor %vm966, %vm967
      %v969 = vsel %vm968, %v960, %v965
      %v970 = vmul.f32 %v953, %v969
      %v972 = vperm.slane %v940, 0
      %v974 = vmul.f32 %v970, %v972
      %v976 = vperm.slane %v941, 0
      %v978 = vadd.f32 %v974, %v976
      %v979 = vpack.c.bf16 %v978, %v978
      %v980 = vld [vmem:[%s10] sm:$0xf]
      %v981 = vld [vmem:[%s10 + $0x4] sm:$0xf]
      %v982 = vld [vmem:[%s10 + $0x8] sm:$0xf]
      %v983 = vld [vmem:[%s10 + $0xc] sm:$0xf]
      %v984 = vld [vmem:[%s11] sm:$0x1]
      %v986 = vperm.slane %v984, 0
      %v992 = vunpack.c.l.b16 %v980
      %v993 = vunpack.c.l.b16 %v981
      %v994 = vunpack.c.l.b16 %v982
      %v995 = vunpack.c.l.b16 %v983
      %v996 = vpack.c.b16 %v993, %v992
      %v997 = vpack.c.b16 %v995, %v994
      %v1001 = vsel %vm589, %v979, 0
      %1003 = vmatpush.bf16.msra.mxu0 0
      %1004 = vmatpush.bf16.msra.mxu0 0
      %1005 = vmatpush.bf16.msra.mxu0 0
      %1006 = vmatpush.bf16.msra.mxu0 0
      %1007 = vmatpush.bf16.msra.mxu0 0
      %1008 = vmatpush.bf16.msra.mxu0 0
      %1009 = vmatpush.bf16.msra.mxu0 %v997
      %1010 = vmatpush.bf16.msra.mxu0 %v996
      %1011 = vmatmul.bf16.gmra.mxu0 %v1001
      %v1012 = vpop.f32.mrf.mxu0
      %v1013 = vadd.f32 %v986, %v1012
      %v1014 = vpop.f32.mrf.mxu0
      %1015 = vdwg.mxu0
      %v1016 = vmul.f32 %v1013, 0.5
      %v1017 = vmul.f32 %v1013, 0.044715
      %v1018 = vmul.f32 %v1017, %v1013
      %v1019 = vmul.f32 %v1018, %v1013
      %v1020 = vadd.f32 %v1013, %v1019
      %v1021 = vmul.f32 %v1020, 0.7978846
      %v1022 = vtanh.pop %v1021
      %v1023 = vadd.f32 %v1022, 1.0
      %v1024 = vmul.f32 %v1016, %v1023
      %v1025 = vpack.c.bf16 %v1024, %v1024
      %v1026 = vld [vmem:[%s12] sm:$0xf]
      %v1027 = vld [vmem:[%s12 + $0x4] sm:$0xf]
      %v1028 = vld [vmem:[%s12 + $0x8] sm:$0xf]
      %v1029 = vld [vmem:[%s12 + $0xc] sm:$0xf]
      %v1030 = vld [vmem:[%s12 + $0x10] sm:$0xf]
      %v1031 = vld [vmem:[%s12 + $0x14] sm:$0xf]
      %v1032 = vld [vmem:[%s12 + $0x18] sm:$0xf]
      %v1033 = vld [vmem:[%s12 + $0x1c] sm:$0xf]
      %v1034 = vld [vmem:[%s13] sm:$0x1]
      %v1036 = vperm.slane %v1034, 0
      %v1046 = vunpack.c.l.b16 %v1026
      %v1047 = vunpack.c.l.b16 %v1027
      %v1048 = vunpack.c.l.b16 %v1028
      %v1049 = vunpack.c.l.b16 %v1029
      %v1050 = vunpack.c.l.b16 %v1030
      %v1051 = vunpack.c.l.b16 %v1031
      %v1052 = vunpack.c.l.b16 %v1032
      %v1053 = vunpack.c.l.b16 %v1033
      %v1054 = vpack.c.b16 %v1047, %v1046
      %v1055 = vpack.c.b16 %v1049, %v1048
      %v1056 = vpack.c.b16 %v1051, %v1050
      %v1057 = vpack.c.b16 %v1053, %v1052
      %vm1062 = vcmask 523264
      %v1064 = vsel %vm1062, %v1025, 0
      %1066 = vmatpush.bf16.msra.mxu0 0
      %1067 = vmatpush.bf16.msra.mxu0 0
      %1068 = vmatpush.bf16.msra.mxu0 0
      %1069 = vmatpush.bf16.msra.mxu0 0
      %1070 = vmatpush.bf16.msra.mxu0 %v1057
      %1071 = vmatpush.bf16.msra.mxu0 %v1056
      %1072 = vmatpush.bf16.msra.mxu0 %v1055
      %1073 = vmatpush.bf16.msra.mxu0 %v1054
      %1074 = vmatmul.bf16.gmra.mxu0 %v1064
      %v1075 = vpop.f32.mrf.mxu0
      %v1076 = vadd.f32 %v1036, %v1075
      %v1077 = vpop.f32.mrf.mxu0
      %1078 = vdwg.mxu0
      %v1079 = vadd.f32 %v978, %v1076
      %v1080 = vld [vmem:[%s14] sm:$0x1]
      %v1081 = vld [vmem:[%s15] sm:$0x1]
      %v1082 = vsel %vm589, %v1079, 0.0
      %1083 = vadd.xlane.f32.xlu0 %v1082
      %v1084 = vpop.xlane.xlu0 %1083
      %v1085 = vmul.f32 %v1084, %v951
      %v1086 = vsub.f32 %v1079, %v1085
      %v1087 = vmul.f32 %v1086, %v1086
      %v1088 = vsel %vm589, %v1087, 0.0
      %1089 = vadd.xlane.f32.xlu0 %v1088
      %v1090 = vpop.xlane.xlu0 %1089
      %v1091 = vmul.f32 %v1090, %v951
      %v1092 = vadd.f32 %v1091, 1e-12
      %v1093 = vrsqrt.pop %v1092
      %v1094 = vmul.f32 %v1093, %v1092
      %v1095 = vmul.f32 %v1094, %v1093
      %v1096 = vmul.f32 0.5, %v1095
      %v1097 = vsub.f32 1.5, %v1096
      %v1098 = vmul.f32 %v1093, %v1097
      %vm1099 = vweird.f32 %v1092
      %vm1100 = vweird.f32 %v1093
      %vm1101 = vmor %vm1099, %vm1100
      %v1102 = vsel %vm1101, %v1093, %v1098
      %v1103 = vmul.f32 %v1086, %v1102
      %v1105 = vperm.slane %v1080, 0
      %v1107 = vmul.f32 %v1103, %v1105
      %v1109 = vperm.slane %v1081, 0
      %v1111 = vadd.f32 %v1107, %v1109
      %1112 = vst.msk [vmem:[%s564] sm:$0xff] %vm589, %v1111
      %p1113 = scmp.lt.s32.totalorder %s31, 1
      %s1114 = scalar_select %p1113, %s31, 1
      %p1115 = scmp.lt.s32.totalorder %s32, 0
      %s1116 = scalar_select %p1115, %s32, 0
      %s1117 = sadd.s32 %s1116, %s1114
      %s1118 = smul.addr %s1117, 8
      %s1119 = scalar_lea.vmem %s16, %s1118
      // Predicated region
      $region85: #{_lambda_.4} parent=83 // pred_check
        %p1120 = pneg %p407
      $region86: #{_lambda_.4} parent=83 // pred_check_branch
        %1122 = sbr.rel (%p1120) target = $region88
      $region87: #{_lambda_.4} parent=83 // pred_region
        _
      $region88: #{_lambda_.4} parent=83 // pred_fallthru
        _
    $region84: #{_lambda_.4} parent=5 // pred_fallthru
      _
    %p1123 = scmp.le.s32.totalorder 2, %s22
    // Predicated region
    $region89: #{_lambda_.4} parent=5 // pred_check
      %p1124 = pneg %p1123
    $region90: #{_lambda_.4} parent=5 // pred_check_branch
      %1126 = sbr.rel (%p1124) target = $region92
    $region91: #{_lambda_.4} parent=5 // pred_region
      %s1127 = ssub.s32 %s22, 2
      // Predicated region
      $region93: #{_lambda_.4} parent=91 // pred_check
        %p1128 = pneg %p413
      $region94: #{_lambda_.4} parent=91 // pred_check_branch
        %1130 = sbr.rel (%p1128) target = $region96
      $region95: #{_lambda_.4} parent=91 // pred_region
        %p1131 = scmp.lt.s32.totalorder %s33, 1
        %s1132 = scalar_select %p1131, %s33, 1
        %p1133 = scmp.lt.s32.totalorder %s34, 0
        %s1134 = scalar_select %p1133, %s34, 0
        %s1135 = sadd.s32 %s1134, %s1132
        %s1136 = smul.addr %s1135, 8
        %s1137 = scalar_lea.vmem %s16, %s1136
      $region96: #{_lambda_.4} parent=91 // pred_fallthru
        _
    $region92: #{_lambda_.4} parent=5 // pred_fallthru
      _
  $region6: #{_lambda_.4} parent=0 // loop_footer
    %s26 = sadd.s32 1, %s22
  $region7: #{_lambda_.4} parent=0 // loop_footer_branch
    %21 = sbr.rel target = $region3
  $region8: #{_lambda_.4} parent=0 // loop_exit
    _

</llo_original>
